<compile_context>
chip_gen: v5e
topology: v5e:2x2
jax: 0.10.0
libtpu: 0.0.40
codegen_flags: <defaults>
</compile_context>

<pallas_src>
import functools

import jax
import jax.numpy as jnp
from jax.experimental import pallas as pl
from jax.experimental.pallas import tpu as pltpu


_DILATIONS = (1, 1, 2)      # self.layers
_NUM_BLOCKS = 2             # num_block (both blocks share the same `net` weights)


def _round_up(v, m):
    return (v + m - 1) // m * m


def _layer_plan(L, K):
    """Static shape plan for the 6 fused conv layers.

    Entries: (weight_idx, L_in, dilation, pad, L_out, relu).
    """
    plan = []
    for blk in range(_NUM_BLOCKS):
        for i, d in enumerate(_DILATIONS):
            pad = K + d - 1                      # nn.Conv1d padding = kernel_size + dilation - 1
            L_out = L + 2 * pad - d * (K - 1)
            # `net` has one ReLU (after layer0); the idcnn-level ReLU follows block0 only.
            relu = (i == 0) or (i == 2 and blk == 0)
            plan.append((i, L, d, pad, L_out, relu))
            L = L_out
    return tuple(plan), L


# --------------------------- fused Pallas kernel -----------------------------

def _idcnn_kernel(x_ref, lw_ref, lb_ref, cw_ref, cb_ref, o_ref, buf_ref, *,
                  K, F, plan, sub):
    # x_ref:  (1, L, D)      lw_ref: (D, F)      lb_ref: (1, F)  f32
    # cw_ref: (3*K*C, F)     (C == F; shared conv weights, tap-major per layer)
    # cb_ref: (3, F) f32     o_ref:  (1, L_final, F)
    # buf_ref: VMEM scratch (L_buf, F) in the compute dtype (zero-padded conv input).
    cdt = buf_ref.dtype

    # Linear layer (MXU, f32 accumulation).
    h = jnp.dot(x_ref[0], lw_ref[...], preferred_element_type=jnp.float32)
    h = h + lb_ref[...]

    # 6 dilated convs, fully unrolled (all shapes static); activation never leaves VMEM.
    for (wi, L_in, d, pad, L_out, relu) in plan:
        off = _round_up(pad, sub)      # interior write offset, sublane-tile aligned
        base = off - pad               # start of the conceptual zero-padded input

        # Zero ONLY the halo strips (previous layer's interior is stale there);
        # the interior is fully overwritten below.
        buf_ref[base:off, :] = jnp.zeros((pad, F), cdt)
        buf_ref[off + L_in:off + L_in + pad, :] = jnp.zeros((pad, F), cdt)
        # Aligned interior write (off is a multiple of the sublane packing).
        buf_ref[off:off + L_in, :] = h.astype(cdt)

        # Per-tap MXU matmuls; accumulator initialized from tap 0 with the bias
        # folded in (no zeros materialization).
        acc = jnp.dot(buf_ref[base:base + L_out, :],
                      cw_ref[wi * K * F:wi * K * F + F, :],
                      preferred_element_type=jnp.float32) + cb_ref[wi:wi + 1, :]
        for k in range(1, K):
            row0 = (wi * K + k) * F
            acc = acc + jnp.dot(buf_ref[base + k * d:base + k * d + L_out, :],
                                cw_ref[row0:row0 + F, :],
                                preferred_element_type=jnp.float32)
        if relu:
            acc = jnp.maximum(acc, 0.0)
        h = acc

    o_ref[0] = h.astype(o_ref.dtype)


def idcnn_forward(x, params, *, compute_dtype=jnp.float32):
    """x: (B, L, input_size) -> (B, L_final, filters).

    compute_dtype=jnp.bfloat16 is the recommended production setting on v6e/v7x
    (bf16 MXU operands + bf16 scratch, f32 accumulation, half the VMEM/HBM bytes);
    it deviates slightly from f32 PyTorch numerics, so relax test tolerances there.
    """
    out_dtype = x.dtype
    B, L, D = x.shape
    F = params["lin_w"].shape[1]
    K = params["conv0_w"].shape[0]

    plan, L_final = _layer_plan(L, K)

    cd = jnp.dtype(compute_dtype)
    sub = 8 * (4 // cd.itemsize)          # sublanes per vreg tile: 8 (f32) / 16 (bf16)
    L_buf = _round_up(max(_round_up(p, sub) + li + p
                          for (_, li, _, p, _, _) in plan), sub)

    # Stack + flatten the three shared conv weights: (K, C, F) each -> (3*K*C, F),
    # tap-major per layer, constant index_map -> DMA'd once, VMEM-resident across batch.
    cw = jnp.concatenate(
        [params[f"conv{i}_w"].reshape(K * F, F) for i in range(3)],
        axis=0).astype(cd)
    cb = jnp.stack([params[f"conv{i}_b"] for i in range(3)], axis=0).astype(jnp.float32)
    lw = params["lin_w"].astype(cd)
    lb = params["lin_b"].reshape(1, F).astype(jnp.float32)
    xc = x.astype(cd)

    # Explicit VMEM budget: double-buffered I/O blocks + grid-invariant weights +
    # scratch + headroom for the VMEM-resident activation values.
    need = (2 * L * D * cd.itemsize
            + 2 * L_final * F * jnp.dtype(out_dtype).itemsize
            + 2 * (D * F + 3 * K * F * F) * cd.itemsize
            + 2 * 4 * F * 4
            + L_buf * F * cd.itemsize
            + 2 * (L_buf + L_final) * F * 4)
    vmem_limit = int(min(96 << 20, max(4 << 20, 4 * need)))

    kernel = functools.partial(_idcnn_kernel, K=K, F=F, plan=plan, sub=sub)
    return pl.pallas_call(
        kernel,
        out_shape=jax.ShapeDtypeStruct((B, L_final, F), out_dtype),
        grid=(B,),
        in_specs=[
            pl.BlockSpec((1, L, D), lambda i: (i, 0, 0)),
            pl.BlockSpec((D, F), lambda i: (0, 0)),
            pl.BlockSpec((1, F), lambda i: (0, 0)),
            pl.BlockSpec((3 * K * F, F), lambda i: (0, 0)),
            pl.BlockSpec((3, F), lambda i: (0, 0)),
        ],
        out_specs=pl.BlockSpec((1, L_final, F), lambda i: (i, 0, 0)),
        scratch_shapes=[pltpu.VMEM((L_buf, F), cd)],
        compiler_params=pltpu.CompilerParams(
            dimension_semantics=("parallel",),
            vmem_limit_bytes=vmem_limit),
    )(xc, lw, lb, cw, cb)


# --------------------------- plain-JAX reference -----------------------------

def _ref_conv(h, w, b, d, relu):
    K = w.shape[0]
    pad = K + d - 1
    L_out = h.shape[1] + 2 * pad - d * (K - 1)
    hp = jnp.pad(h, ((0, 0), (pad, pad), (0, 0)))
    acc = jnp.zeros((h.shape[0], L_out, w.shape[2]), jnp.float32)
    for k in range(K):
        acc = acc + jnp.einsum("blc,cf->blf", hp[:, k * d:k * d + L_out, :], w[k])
    acc = acc + b
    return jnp.maximum(acc, 0.0) if relu else acc


def idcnn_reference(x, params):
    h = x @ params["lin_w"] + params["lin_b"]
    for final_relu in (True, False):
        for i, d in enumerate(_DILATIONS):
            relu = (i == 0) or (i == 2 and final_relu)
            h = _ref_conv(h, params[f"conv{i}_w"], params[f"conv{i}_b"], d, relu)
    return h


# --------------------------------- main ---------------------------------------

if __name__ == "__main__":
    # small shapes: batch=2, seq=8, input_size=16, filters=8, kernel_size=4, num_block=2
    B, L, INPUT_SIZE, FILTERS, KSIZE = 2, 8, 16, 8, 4

    key = jax.random.PRNGKey(0)
    k_x, k_lw, k_lb, k_cw, k_cb = jax.random.split(key, 5)
    x = jax.random.normal(k_x, (B, L, INPUT_SIZE), jnp.float32)

    params = {
        "lin_w": 0.1 * jax.random.normal(k_lw, (INPUT_SIZE, FILTERS), jnp.float32),
        "lin_b": 0.1 * jax.random.normal(k_lb, (FILTERS,), jnp.float32),
    }
    kws = jax.random.split(k_cw, 3)
    kbs = jax.random.split(k_cb, 3)
    for i in range(3):
        # conv weights stored as (K, C_in, C_out) = transposed PyTorch (C_out, C_in, K)
        params[f"conv{i}_w"] = 0.1 * jax.random.normal(
            kws[i], (KSIZE, FILTERS, FILTERS), jnp.float32)
        params[f"conv{i}_b"] = 0.1 * jax.random.normal(kbs[i], (FILTERS,), jnp.float32)

    # f32 compute path: bit-matches the PyTorch f32 module numerics.
    # (On v6e/v7x production shapes call with compute_dtype=jnp.bfloat16 and
    #  relax the tolerance to ~5e-2.)
    out = jax.jit(idcnn_forward)(x, params)
    out = jax.block_until_ready(out)

    ref = idcnn_reference(x, params)
    assert out.shape == ref.shape, (out.shape, ref.shape)
    assert jnp.allclose(out, ref, atol=1e-4, rtol=1e-4), \
        float(jnp.max(jnp.abs(out - ref)))

    print("KERNEL_OK")
</pallas_src>

<mosaic_0001>
module attributes {stable_mosaic.version = 11 : i64} {
  func.func @_idcnn_kernel(%arg0: i32, %arg1: memref<1x8x16xf32, #tpu.memory_space<vmem>>, %arg2: memref<16x8xf32, #tpu.memory_space<vmem>>, %arg3: memref<1x8xf32, #tpu.memory_space<vmem>>, %arg4: memref<96x8xf32, #tpu.memory_space<vmem>>, %arg5: memref<3x8xf32, #tpu.memory_space<vmem>>, %arg6: memref<1x36x8xf32, #tpu.memory_space<vmem>>, %arg7: memref<48x8xf32, #tpu.memory_space<vmem>>) attributes {dimension_semantics = [#tpu.dimension_semantics<parallel>], iteration_bounds = array<i64: 2>, scalar_prefetch = 0 : i64, scratch_operands = 1 : i64, tpu.core_type = #tpu.core_type<tc>, window_params = [{transform_indices = @transform_0, window_bounds = array<i64: 1, 8, 16>}, {pipeline_mode = #tpu.pipeline_mode<synchronous>, transform_indices = @transform_1, window_bounds = array<i64: 16, 8>}, {pipeline_mode = #tpu.pipeline_mode<synchronous>, transform_indices = @transform_2, window_bounds = array<i64: 1, 8>}, {pipeline_mode = #tpu.pipeline_mode<synchronous>, transform_indices = @transform_3, window_bounds = array<i64: 96, 8>}, {pipeline_mode = #tpu.pipeline_mode<synchronous>, transform_indices = @transform_4, window_bounds = array<i64: 3, 8>}, {transform_indices = @transform_5, window_bounds = array<i64: 1, 36, 8>}]} {
    %c0 = arith.constant 0 : index
    %c0_0 = arith.constant 0 : index
    %c0_1 = arith.constant 0 : index
    %0 = vector.load %arg1[%c0, %c0_0, %c0_1] : memref<1x8x16xf32, #tpu.memory_space<vmem>>, vector<1x8x16xf32>
    %1 = vector.shape_cast %0 : vector<1x8x16xf32> to vector<8x16xf32>
    %c0_2 = arith.constant 0 : index
    %c0_3 = arith.constant 0 : index
    %2 = vector.load %arg2[%c0_2, %c0_3] : memref<16x8xf32, #tpu.memory_space<vmem>>, vector<16x8xf32>
    %cst = arith.constant dense<0.000000e+00> : vector<8x8xf32>
    %3 = tpu.matmul %1, %2, %cst {dimension_numbers = #tpu.dot_dimension_numbers<[1], [0], [0], [1], [0, 0, 1, 1], [], []>} : vector<8x16xf32>, vector<16x8xf32>, vector<8x8xf32> -> vector<8x8xf32>
    %c0_4 = arith.constant 0 : index
    %c0_5 = arith.constant 0 : index
    %4 = vector.load %arg3[%c0_4, %c0_5] : memref<1x8xf32, #tpu.memory_space<vmem>>, vector<1x8xf32>
    %5 = vector.broadcast %4 : vector<1x8xf32> to vector<8x8xf32>
    %6 = arith.addf %3, %5 : vector<8x8xf32>
    %cst_6 = arith.constant 0.000000e+00 : f32
    %7 = vector.broadcast %cst_6 : f32 to vector<4x8xf32>
    %c4 = arith.constant 4 : index
    %c0_7 = arith.constant 0 : index
    %8 = vector.load %arg7[%c4, %c0_7] : memref<48x8xf32, #tpu.memory_space<vmem>>, vector<4x8xf32>
    tpu.vector_store %arg7[%c4, %c0_7], %7 {strides = array<i32>} : memref<48x8xf32, #tpu.memory_space<vmem>>, vector<4x8xf32>,
    %cst_8 = arith.constant 0.000000e+00 : f32
    %9 = vector.broadcast %cst_8 : f32 to vector<4x8xf32>
    %c16 = arith.constant 16 : index
    %c0_9 = arith.constant 0 : index
    %10 = vector.load %arg7[%c16, %c0_9] : memref<48x8xf32, #tpu.memory_space<vmem>>, vector<4x8xf32>
    tpu.vector_store %arg7[%c16, %c0_9], %9 {strides = array<i32>} : memref<48x8xf32, #tpu.memory_space<vmem>>, vector<4x8xf32>,
    %c8 = arith.constant 8 : index
    %c0_10 = arith.constant 0 : index
    %11 = vector.load %arg7[%c8, %c0_10] : memref<48x8xf32, #tpu.memory_space<vmem>>, vector<8x8xf32>
    tpu.vector_store %arg7[%c8, %c0_10], %6 {strides = array<i32>} : memref<48x8xf32, #tpu.memory_space<vmem>>, vector<8x8xf32>,
    %c4_11 = arith.constant 4 : index
    %c0_12 = arith.constant 0 : index
    %12 = vector.load %arg7[%c4_11, %c0_12] : memref<48x8xf32, #tpu.memory_space<vmem>>, vector<13x8xf32>
    %c0_13 = arith.constant 0 : index
    %c0_14 = arith.constant 0 : index
    %13 = vector.load %arg4[%c0_13, %c0_14] : memref<96x8xf32, #tpu.memory_space<vmem>>, vector<8x8xf32>
    %cst_15 = arith.constant dense<0.000000e+00> : vector<13x8xf32>
    %14 = tpu.matmul %12, %13, %cst_15 {dimension_numbers = #tpu.dot_dimension_numbers<[1], [0], [0], [1], [0, 0, 1, 1], [], []>} : vector<13x8xf32>, vector<8x8xf32>, vector<13x8xf32> -> vector<13x8xf32>
    %c0_16 = arith.constant 0 : index
    %c0_17 = arith.constant 0 : index
    %15 = vector.load %arg5[%c0_16, %c0_17] : memref<3x8xf32, #tpu.memory_space<vmem>>, vector<1x8xf32>
    %16 = vector.broadcast %15 : vector<1x8xf32> to vector<13x8xf32>
    %17 = arith.addf %14, %16 : vector<13x8xf32>
    %c5 = arith.constant 5 : index
    %c0_18 = arith.constant 0 : index
    %18 = vector.load %arg7[%c5, %c0_18] : memref<48x8xf32, #tpu.memory_space<vmem>>, vector<13x8xf32>
    %c8_19 = arith.constant 8 : index
    %c0_20 = arith.constant 0 : index
    %19 = vector.load %arg4[%c8_19, %c0_20] : memref<96x8xf32, #tpu.memory_space<vmem>>, vector<8x8xf32>
    %cst_21 = arith.constant dense<0.000000e+00> : vector<13x8xf32>
    %20 = tpu.matmul %18, %19, %cst_21 {dimension_numbers = #tpu.dot_dimension_numbers<[1], [0], [0], [1], [0, 0, 1, 1], [], []>} : vector<13x8xf32>, vector<8x8xf32>, vector<13x8xf32> -> vector<13x8xf32>
    %21 = arith.addf %17, %20 : vector<13x8xf32>
    %c6 = arith.constant 6 : index
    %c0_22 = arith.constant 0 : index
    %22 = vector.load %arg7[%c6, %c0_22] : memref<48x8xf32, #tpu.memory_space<vmem>>, vector<13x8xf32>
    %c16_23 = arith.constant 16 : index
    %c0_24 = arith.constant 0 : index
    %23 = vector.load %arg4[%c16_23, %c0_24] : memref<96x8xf32, #tpu.memory_space<vmem>>, vector<8x8xf32>
    %cst_25 = arith.constant dense<0.000000e+00> : vector<13x8xf32>
    %24 = tpu.matmul %22, %23, %cst_25 {dimension_numbers = #tpu.dot_dimension_numbers<[1], [0], [0], [1], [0, 0, 1, 1], [], []>} : vector<13x8xf32>, vector<8x8xf32>, vector<13x8xf32> -> vector<13x8xf32>
    %25 = arith.addf %21, %24 : vector<13x8xf32>
    %c7 = arith.constant 7 : index
    %c0_26 = arith.constant 0 : index
    %26 = vector.load %arg7[%c7, %c0_26] : memref<48x8xf32, #tpu.memory_space<vmem>>, vector<13x8xf32>
    %c24 = arith.constant 24 : index
    %c0_27 = arith.constant 0 : index
    %27 = vector.load %arg4[%c24, %c0_27] : memref<96x8xf32, #tpu.memory_space<vmem>>, vector<8x8xf32>
    %cst_28 = arith.constant dense<0.000000e+00> : vector<13x8xf32>
    %28 = tpu.matmul %26, %27, %cst_28 {dimension_numbers = #tpu.dot_dimension_numbers<[1], [0], [0], [1], [0, 0, 1, 1], [], []>} : vector<13x8xf32>, vector<8x8xf32>, vector<13x8xf32> -> vector<13x8xf32>
    %29 = arith.addf %25, %28 : vector<13x8xf32>
    %cst_29 = arith.constant 0.000000e+00 : f32
    %30 = vector.broadcast %cst_29 : f32 to vector<13x8xf32>
    %31 = arith.maximumf %29, %30 : vector<13x8xf32>
    %cst_30 = arith.constant 0.000000e+00 : f32
    %32 = vector.broadcast %cst_30 : f32 to vector<4x8xf32>
    %c4_31 = arith.constant 4 : index
    %c0_32 = arith.constant 0 : index
    %33 = vector.load %arg7[%c4_31, %c0_32] : memref<48x8xf32, #tpu.memory_space<vmem>>, vector<4x8xf32>
    tpu.vector_store %arg7[%c4_31, %c0_32], %32 {strides = array<i32>} : memref<48x8xf32, #tpu.memory_space<vmem>>, vector<4x8xf32>,
    %cst_33 = arith.constant 0.000000e+00 : f32
    %34 = vector.broadcast %cst_33 : f32 to vector<4x8xf32>
    %c21 = arith.constant 21 : index
    %c0_34 = arith.constant 0 : index
    %35 = vector.load %arg7[%c21, %c0_34] : memref<48x8xf32, #tpu.memory_space<vmem>>, vector<4x8xf32>
    tpu.vector_store %arg7[%c21, %c0_34], %34 {strides = array<i32>} : memref<48x8xf32, #tpu.memory_space<vmem>>, vector<4x8xf32>,
    %c8_35 = arith.constant 8 : index
    %c0_36 = arith.constant 0 : index
    %36 = vector.load %arg7[%c8_35, %c0_36] : memref<48x8xf32, #tpu.memory_space<vmem>>, vector<13x8xf32>
    tpu.vector_store %arg7[%c8_35, %c0_36], %31 {strides = array<i32>} : memref<48x8xf32, #tpu.memory_space<vmem>>, vector<13x8xf32>,
    %c4_37 = arith.constant 4 : index
    %c0_38 = arith.constant 0 : index
    %37 = vector.load %arg7[%c4_37, %c0_38] : memref<48x8xf32, #tpu.memory_space<vmem>>, vector<18x8xf32>
    %c32 = arith.constant 32 : index
    %c0_39 = arith.constant 0 : index
    %38 = vector.load %arg4[%c32, %c0_39] : memref<96x8xf32, #tpu.memory_space<vmem>>, vector<8x8xf32>
    %cst_40 = arith.constant dense<0.000000e+00> : vector<18x8xf32>
    %39 = tpu.matmul %37, %38, %cst_40 {dimension_numbers = #tpu.dot_dimension_numbers<[1], [0], [0], [1], [0, 0, 1, 1], [], []>} : vector<18x8xf32>, vector<8x8xf32>, vector<18x8xf32> -> vector<18x8xf32>
    %c1 = arith.constant 1 : index
    %c0_41 = arith.constant 0 : index
    %40 = vector.load %arg5[%c1, %c0_41] : memref<3x8xf32, #tpu.memory_space<vmem>>, vector<1x8xf32>
    %41 = vector.broadcast %40 : vector<1x8xf32> to vector<18x8xf32>
    %42 = arith.addf %39, %41 : vector<18x8xf32>
    %c5_42 = arith.constant 5 : index
    %c0_43 = arith.constant 0 : index
    %43 = vector.load %arg7[%c5_42, %c0_43] : memref<48x8xf32, #tpu.memory_space<vmem>>, vector<18x8xf32>
    %c40 = arith.constant 40 : index
    %c0_44 = arith.constant 0 : index
    %44 = vector.load %arg4[%c40, %c0_44] : memref<96x8xf32, #tpu.memory_space<vmem>>, vector<8x8xf32>
    %cst_45 = arith.constant dense<0.000000e+00> : vector<18x8xf32>
    %45 = tpu.matmul %43, %44, %cst_45 {dimension_numbers = #tpu.dot_dimension_numbers<[1], [0], [0], [1], [0, 0, 1, 1], [], []>} : vector<18x8xf32>, vector<8x8xf32>, vector<18x8xf32> -> vector<18x8xf32>
    %46 = arith.addf %42, %45 : vector<18x8xf32>
    %c6_46 = arith.constant 6 : index
    %c0_47 = arith.constant 0 : index
    %47 = vector.load %arg7[%c6_46, %c0_47] : memref<48x8xf32, #tpu.memory_space<vmem>>, vector<18x8xf32>
    %c48 = arith.constant 48 : index
    %c0_48 = arith.constant 0 : index
    %48 = vector.load %arg4[%c48, %c0_48] : memref<96x8xf32, #tpu.memory_space<vmem>>, vector<8x8xf32>
    %cst_49 = arith.constant dense<0.000000e+00> : vector<18x8xf32>
    %49 = tpu.matmul %47, %48, %cst_49 {dimension_numbers = #tpu.dot_dimension_numbers<[1], [0], [0], [1], [0, 0, 1, 1], [], []>} : vector<18x8xf32>, vector<8x8xf32>, vector<18x8xf32> -> vector<18x8xf32>
    %50 = arith.addf %46, %49 : vector<18x8xf32>
    %c7_50 = arith.constant 7 : index
    %c0_51 = arith.constant 0 : index
    %51 = vector.load %arg7[%c7_50, %c0_51] : memref<48x8xf32, #tpu.memory_space<vmem>>, vector<18x8xf32>
    %c56 = arith.constant 56 : index
    %c0_52 = arith.constant 0 : index
    %52 = vector.load %arg4[%c56, %c0_52] : memref<96x8xf32, #tpu.memory_space<vmem>>, vector<8x8xf32>
    %cst_53 = arith.constant dense<0.000000e+00> : vector<18x8xf32>
    %53 = tpu.matmul %51, %52, %cst_53 {dimension_numbers = #tpu.dot_dimension_numbers<[1], [0], [0], [1], [0, 0, 1, 1], [], []>} : vector<18x8xf32>, vector<8x8xf32>, vector<18x8xf32> -> vector<18x8xf32>
    %54 = arith.addf %50, %53 : vector<18x8xf32>
    %cst_54 = arith.constant 0.000000e+00 : f32
    %55 = vector.broadcast %cst_54 : f32 to vector<5x8xf32>
    %c3 = arith.constant 3 : index
    %c0_55 = arith.constant 0 : index
    %56 = vector.load %arg7[%c3, %c0_55] : memref<48x8xf32, #tpu.memory_space<vmem>>, vector<5x8xf32>
    tpu.vector_store %arg7[%c3, %c0_55], %55 {strides = array<i32>} : memref<48x8xf32, #tpu.memory_space<vmem>>, vector<5x8xf32>,
    %cst_56 = arith.constant 0.000000e+00 : f32
    %57 = vector.broadcast %cst_56 : f32 to vector<5x8xf32>
    %c26 = arith.constant 26 : index
    %c0_57 = arith.constant 0 : index
    %58 = vector.load %arg7[%c26, %c0_57] : memref<48x8xf32, #tpu.memory_space<vmem>>, vector<5x8xf32>
    tpu.vector_store %arg7[%c26, %c0_57], %57 {strides = array<i32>} : memref<48x8xf32, #tpu.memory_space<vmem>>, vector<5x8xf32>,
    %c8_58 = arith.constant 8 : index
    %c0_59 = arith.constant 0 : index
    %59 = vector.load %arg7[%c8_58, %c0_59] : memref<48x8xf32, #tpu.memory_space<vmem>>, vector<18x8xf32>
    tpu.vector_store %arg7[%c8_58, %c0_59], %54 {strides = array<i32>} : memref<48x8xf32, #tpu.memory_space<vmem>>, vector<18x8xf32>,
    %c3_60 = arith.constant 3 : index
    %c0_61 = arith.constant 0 : index
    %60 = vector.load %arg7[%c3_60, %c0_61] : memref<48x8xf32, #tpu.memory_space<vmem>>, vector<22x8xf32>
    %c64 = arith.constant 64 : index
    %c0_62 = arith.constant 0 : index
    %61 = vector.load %arg4[%c64, %c0_62] : memref<96x8xf32, #tpu.memory_space<vmem>>, vector<8x8xf32>
    %cst_63 = arith.constant dense<0.000000e+00> : vector<22x8xf32>
    %62 = tpu.matmul %60, %61, %cst_63 {dimension_numbers = #tpu.dot_dimension_numbers<[1], [0], [0], [1], [0, 0, 1, 1], [], []>} : vector<22x8xf32>, vector<8x8xf32>, vector<22x8xf32> -> vector<22x8xf32>
    %c2 = arith.constant 2 : index
    %c0_64 = arith.constant 0 : index
    %63 = vector.load %arg5[%c2, %c0_64] : memref<3x8xf32, #tpu.memory_space<vmem>>, vector<1x8xf32>
    %64 = vector.broadcast %63 : vector<1x8xf32> to vector<22x8xf32>
    %65 = arith.addf %62, %64 : vector<22x8xf32>
    %c5_65 = arith.constant 5 : index
    %c0_66 = arith.constant 0 : index
    %66 = vector.load %arg7[%c5_65, %c0_66] : memref<48x8xf32, #tpu.memory_space<vmem>>, vector<22x8xf32>
    %c72 = arith.constant 72 : index
    %c0_67 = arith.constant 0 : index
    %67 = vector.load %arg4[%c72, %c0_67] : memref<96x8xf32, #tpu.memory_space<vmem>>, vector<8x8xf32>
    %cst_68 = arith.constant dense<0.000000e+00> : vector<22x8xf32>
    %68 = tpu.matmul %66, %67, %cst_68 {dimension_numbers = #tpu.dot_dimension_numbers<[1], [0], [0], [1], [0, 0, 1, 1], [], []>} : vector<22x8xf32>, vector<8x8xf32>, vector<22x8xf32> -> vector<22x8xf32>
    %69 = arith.addf %65, %68 : vector<22x8xf32>
    %c7_69 = arith.constant 7 : index
    %c0_70 = arith.constant 0 : index
    %70 = vector.load %arg7[%c7_69, %c0_70] : memref<48x8xf32, #tpu.memory_space<vmem>>, vector<22x8xf32>
    %c80 = arith.constant 80 : index
    %c0_71 = arith.constant 0 : index
    %71 = vector.load %arg4[%c80, %c0_71] : memref<96x8xf32, #tpu.memory_space<vmem>>, vector<8x8xf32>
    %cst_72 = arith.constant dense<0.000000e+00> : vector<22x8xf32>
    %72 = tpu.matmul %70, %71, %cst_72 {dimension_numbers = #tpu.dot_dimension_numbers<[1], [0], [0], [1], [0, 0, 1, 1], [], []>} : vector<22x8xf32>, vector<8x8xf32>, vector<22x8xf32> -> vector<22x8xf32>
    %73 = arith.addf %69, %72 : vector<22x8xf32>
    %c9 = arith.constant 9 : index
    %c0_73 = arith.constant 0 : index
    %74 = vector.load %arg7[%c9, %c0_73] : memref<48x8xf32, #tpu.memory_space<vmem>>, vector<22x8xf32>
    %c88 = arith.constant 88 : index
    %c0_74 = arith.constant 0 : index
    %75 = vector.load %arg4[%c88, %c0_74] : memref<96x8xf32, #tpu.memory_space<vmem>>, vector<8x8xf32>
    %cst_75 = arith.constant dense<0.000000e+00> : vector<22x8xf32>
    %76 = tpu.matmul %74, %75, %cst_75 {dimension_numbers = #tpu.dot_dimension_numbers<[1], [0], [0], [1], [0, 0, 1, 1], [], []>} : vector<22x8xf32>, vector<8x8xf32>, vector<22x8xf32> -> vector<22x8xf32>
    %77 = arith.addf %73, %76 : vector<22x8xf32>
    %cst_76 = arith.constant 0.000000e+00 : f32
    %78 = vector.broadcast %cst_76 : f32 to vector<22x8xf32>
    %79 = arith.maximumf %77, %78 : vector<22x8xf32>
    %cst_77 = arith.constant 0.000000e+00 : f32
    %80 = vector.broadcast %cst_77 : f32 to vector<4x8xf32>
    %c4_78 = arith.constant 4 : index
    %c0_79 = arith.constant 0 : index
    %81 = vector.load %arg7[%c4_78, %c0_79] : memref<48x8xf32, #tpu.memory_space<vmem>>, vector<4x8xf32>
    tpu.vector_store %arg7[%c4_78, %c0_79], %80 {strides = array<i32>} : memref<48x8xf32, #tpu.memory_space<vmem>>, vector<4x8xf32>,
    %cst_80 = arith.constant 0.000000e+00 : f32
    %82 = vector.broadcast %cst_80 : f32 to vector<4x8xf32>
    %c30 = arith.constant 30 : index
    %c0_81 = arith.constant 0 : index
    %83 = vector.load %arg7[%c30, %c0_81] : memref<48x8xf32, #tpu.memory_space<vmem>>, vector<4x8xf32>
    tpu.vector_store %arg7[%c30, %c0_81], %82 {strides = array<i32>} : memref<48x8xf32, #tpu.memory_space<vmem>>, vector<4x8xf32>,
    %c8_82 = arith.constant 8 : index
    %c0_83 = arith.constant 0 : index
    %84 = vector.load %arg7[%c8_82, %c0_83] : memref<48x8xf32, #tpu.memory_space<vmem>>, vector<22x8xf32>
    tpu.vector_store %arg7[%c8_82, %c0_83], %79 {strides = array<i32>} : memref<48x8xf32, #tpu.memory_space<vmem>>, vector<22x8xf32>,
    %c4_84 = arith.constant 4 : index
    %c0_85 = arith.constant 0 : index
    %85 = vector.load %arg7[%c4_84, %c0_85] : memref<48x8xf32, #tpu.memory_space<vmem>>, vector<27x8xf32>
    %c0_86 = arith.constant 0 : index
    %c0_87 = arith.constant 0 : index
    %86 = vector.load %arg4[%c0_86, %c0_87] : memref<96x8xf32, #tpu.memory_space<vmem>>, vector<8x8xf32>
    %cst_88 = arith.constant dense<0.000000e+00> : vector<27x8xf32>
    %87 = tpu.matmul %85, %86, %cst_88 {dimension_numbers = #tpu.dot_dimension_numbers<[1], [0], [0], [1], [0, 0, 1, 1], [], []>} : vector<27x8xf32>, vector<8x8xf32>, vector<27x8xf32> -> vector<27x8xf32>
    %c0_89 = arith.constant 0 : index
    %c0_90 = arith.constant 0 : index
    %88 = vector.load %arg5[%c0_89, %c0_90] : memref<3x8xf32, #tpu.memory_space<vmem>>, vector<1x8xf32>
    %89 = vector.broadcast %88 : vector<1x8xf32> to vector<27x8xf32>
    %90 = arith.addf %87, %89 : vector<27x8xf32>
    %c5_91 = arith.constant 5 : index
    %c0_92 = arith.constant 0 : index
    %91 = vector.load %arg7[%c5_91, %c0_92] : memref<48x8xf32, #tpu.memory_space<vmem>>, vector<27x8xf32>
    %c8_93 = arith.constant 8 : index
    %c0_94 = arith.constant 0 : index
    %92 = vector.load %arg4[%c8_93, %c0_94] : memref<96x8xf32, #tpu.memory_space<vmem>>, vector<8x8xf32>
    %cst_95 = arith.constant dense<0.000000e+00> : vector<27x8xf32>
    %93 = tpu.matmul %91, %92, %cst_95 {dimension_numbers = #tpu.dot_dimension_numbers<[1], [0], [0], [1], [0, 0, 1, 1], [], []>} : vector<27x8xf32>, vector<8x8xf32>, vector<27x8xf32> -> vector<27x8xf32>
    %94 = arith.addf %90, %93 : vector<27x8xf32>
    %c6_96 = arith.constant 6 : index
    %c0_97 = arith.constant 0 : index
    %95 = vector.load %arg7[%c6_96, %c0_97] : memref<48x8xf32, #tpu.memory_space<vmem>>, vector<27x8xf32>
    %c16_98 = arith.constant 16 : index
    %c0_99 = arith.constant 0 : index
    %96 = vector.load %arg4[%c16_98, %c0_99] : memref<96x8xf32, #tpu.memory_space<vmem>>, vector<8x8xf32>
    %cst_100 = arith.constant dense<0.000000e+00> : vector<27x8xf32>
    %97 = tpu.matmul %95, %96, %cst_100 {dimension_numbers = #tpu.dot_dimension_numbers<[1], [0], [0], [1], [0, 0, 1, 1], [], []>} : vector<27x8xf32>, vector<8x8xf32>, vector<27x8xf32> -> vector<27x8xf32>
    %98 = arith.addf %94, %97 : vector<27x8xf32>
    %c7_101 = arith.constant 7 : index
    %c0_102 = arith.constant 0 : index
    %99 = vector.load %arg7[%c7_101, %c0_102] : memref<48x8xf32, #tpu.memory_space<vmem>>, vector<27x8xf32>
    %c24_103 = arith.constant 24 : index
    %c0_104 = arith.constant 0 : index
    %100 = vector.load %arg4[%c24_103, %c0_104] : memref<96x8xf32, #tpu.memory_space<vmem>>, vector<8x8xf32>
    %cst_105 = arith.constant dense<0.000000e+00> : vector<27x8xf32>
    %101 = tpu.matmul %99, %100, %cst_105 {dimension_numbers = #tpu.dot_dimension_numbers<[1], [0], [0], [1], [0, 0, 1, 1], [], []>} : vector<27x8xf32>, vector<8x8xf32>, vector<27x8xf32> -> vector<27x8xf32>
    %102 = arith.addf %98, %101 : vector<27x8xf32>
    %cst_106 = arith.constant 0.000000e+00 : f32
    %103 = vector.broadcast %cst_106 : f32 to vector<27x8xf32>
    %104 = arith.maximumf %102, %103 : vector<27x8xf32>
    %cst_107 = arith.constant 0.000000e+00 : f32
    %105 = vector.broadcast %cst_107 : f32 to vector<4x8xf32>
    %c4_108 = arith.constant 4 : index
    %c0_109 = arith.constant 0 : index
    %106 = vector.load %arg7[%c4_108, %c0_109] : memref<48x8xf32, #tpu.memory_space<vmem>>, vector<4x8xf32>
    tpu.vector_store %arg7[%c4_108, %c0_109], %105 {strides = array<i32>} : memref<48x8xf32, #tpu.memory_space<vmem>>, vector<4x8xf32>,
    %cst_110 = arith.constant 0.000000e+00 : f32
    %107 = vector.broadcast %cst_110 : f32 to vector<4x8xf32>
    %c35 = arith.constant 35 : index
    %c0_111 = arith.constant 0 : index
    %108 = vector.load %arg7[%c35, %c0_111] : memref<48x8xf32, #tpu.memory_space<vmem>>, vector<4x8xf32>
    tpu.vector_store %arg7[%c35, %c0_111], %107 {strides = array<i32>} : memref<48x8xf32, #tpu.memory_space<vmem>>, vector<4x8xf32>,
    %c8_112 = arith.constant 8 : index
    %c0_113 = arith.constant 0 : index
    %109 = vector.load %arg7[%c8_112, %c0_113] : memref<48x8xf32, #tpu.memory_space<vmem>>, vector<27x8xf32>
    tpu.vector_store %arg7[%c8_112, %c0_113], %104 {strides = array<i32>} : memref<48x8xf32, #tpu.memory_space<vmem>>, vector<27x8xf32>,
    %c4_114 = arith.constant 4 : index
    %c0_115 = arith.constant 0 : index
    %110 = vector.load %arg7[%c4_114, %c0_115] : memref<48x8xf32, #tpu.memory_space<vmem>>, vector<32x8xf32>
    %c32_116 = arith.constant 32 : index
    %c0_117 = arith.constant 0 : index
    %111 = vector.load %arg4[%c32_116, %c0_117] : memref<96x8xf32, #tpu.memory_space<vmem>>, vector<8x8xf32>
    %cst_118 = arith.constant dense<0.000000e+00> : vector<32x8xf32>
    %112 = tpu.matmul %110, %111, %cst_118 {dimension_numbers = #tpu.dot_dimension_numbers<[1], [0], [0], [1], [0, 0, 1, 1], [], []>} : vector<32x8xf32>, vector<8x8xf32>, vector<32x8xf32> -> vector<32x8xf32>
    %c1_119 = arith.constant 1 : index
    %c0_120 = arith.constant 0 : index
    %113 = vector.load %arg5[%c1_119, %c0_120] : memref<3x8xf32, #tpu.memory_space<vmem>>, vector<1x8xf32>
    %114 = vector.broadcast %113 : vector<1x8xf32> to vector<32x8xf32>
    %115 = arith.addf %112, %114 : vector<32x8xf32>
    %c5_121 = arith.constant 5 : index
    %c0_122 = arith.constant 0 : index
    %116 = vector.load %arg7[%c5_121, %c0_122] : memref<48x8xf32, #tpu.memory_space<vmem>>, vector<32x8xf32>
    %c40_123 = arith.constant 40 : index
    %c0_124 = arith.constant 0 : index
    %117 = vector.load %arg4[%c40_123, %c0_124] : memref<96x8xf32, #tpu.memory_space<vmem>>, vector<8x8xf32>
    %cst_125 = arith.constant dense<0.000000e+00> : vector<32x8xf32>
    %118 = tpu.matmul %116, %117, %cst_125 {dimension_numbers = #tpu.dot_dimension_numbers<[1], [0], [0], [1], [0, 0, 1, 1], [], []>} : vector<32x8xf32>, vector<8x8xf32>, vector<32x8xf32> -> vector<32x8xf32>
    %119 = arith.addf %115, %118 : vector<32x8xf32>
    %c6_126 = arith.constant 6 : index
    %c0_127 = arith.constant 0 : index
    %120 = vector.load %arg7[%c6_126, %c0_127] : memref<48x8xf32, #tpu.memory_space<vmem>>, vector<32x8xf32>
    %c48_128 = arith.constant 48 : index
    %c0_129 = arith.constant 0 : index
    %121 = vector.load %arg4[%c48_128, %c0_129] : memref<96x8xf32, #tpu.memory_space<vmem>>, vector<8x8xf32>
    %cst_130 = arith.constant dense<0.000000e+00> : vector<32x8xf32>
    %122 = tpu.matmul %120, %121, %cst_130 {dimension_numbers = #tpu.dot_dimension_numbers<[1], [0], [0], [1], [0, 0, 1, 1], [], []>} : vector<32x8xf32>, vector<8x8xf32>, vector<32x8xf32> -> vector<32x8xf32>
    %123 = arith.addf %119, %122 : vector<32x8xf32>
    %c7_131 = arith.constant 7 : index
    %c0_132 = arith.constant 0 : index
    %124 = vector.load %arg7[%c7_131, %c0_132] : memref<48x8xf32, #tpu.memory_space<vmem>>, vector<32x8xf32>
    %c56_133 = arith.constant 56 : index
    %c0_134 = arith.constant 0 : index
    %125 = vector.load %arg4[%c56_133, %c0_134] : memref<96x8xf32, #tpu.memory_space<vmem>>, vector<8x8xf32>
    %cst_135 = arith.constant dense<0.000000e+00> : vector<32x8xf32>
    %126 = tpu.matmul %124, %125, %cst_135 {dimension_numbers = #tpu.dot_dimension_numbers<[1], [0], [0], [1], [0, 0, 1, 1], [], []>} : vector<32x8xf32>, vector<8x8xf32>, vector<32x8xf32> -> vector<32x8xf32>
    %127 = arith.addf %123, %126 : vector<32x8xf32>
    %cst_136 = arith.constant 0.000000e+00 : f32
    %128 = vector.broadcast %cst_136 : f32 to vector<5x8xf32>
    %c3_137 = arith.constant 3 : index
    %c0_138 = arith.constant 0 : index
    %129 = vector.load %arg7[%c3_137, %c0_138] : memref<48x8xf32, #tpu.memory_space<vmem>>, vector<5x8xf32>
    tpu.vector_store %arg7[%c3_137, %c0_138], %128 {strides = array<i32>} : memref<48x8xf32, #tpu.memory_space<vmem>>, vector<5x8xf32>,
    %cst_139 = arith.constant 0.000000e+00 : f32
    %130 = vector.broadcast %cst_139 : f32 to vector<5x8xf32>
    %c40_140 = arith.constant 40 : index
    %c0_141 = arith.constant 0 : index
    %131 = vector.load %arg7[%c40_140, %c0_141] : memref<48x8xf32, #tpu.memory_space<vmem>>, vector<5x8xf32>
    tpu.vector_store %arg7[%c40_140, %c0_141], %130 {strides = array<i32>} : memref<48x8xf32, #tpu.memory_space<vmem>>, vector<5x8xf32>,
    %c8_142 = arith.constant 8 : index
    %c0_143 = arith.constant 0 : index
    %132 = vector.load %arg7[%c8_142, %c0_143] : memref<48x8xf32, #tpu.memory_space<vmem>>, vector<32x8xf32>
    tpu.vector_store %arg7[%c8_142, %c0_143], %127 {strides = array<i32>} : memref<48x8xf32, #tpu.memory_space<vmem>>, vector<32x8xf32>,
    %c3_144 = arith.constant 3 : index
    %c0_145 = arith.constant 0 : index
    %133 = vector.load %arg7[%c3_144, %c0_145] : memref<48x8xf32, #tpu.memory_space<vmem>>, vector<36x8xf32>
    %c64_146 = arith.constant 64 : index
    %c0_147 = arith.constant 0 : index
    %134 = vector.load %arg4[%c64_146, %c0_147] : memref<96x8xf32, #tpu.memory_space<vmem>>, vector<8x8xf32>
    %cst_148 = arith.constant dense<0.000000e+00> : vector<36x8xf32>
    %135 = tpu.matmul %133, %134, %cst_148 {dimension_numbers = #tpu.dot_dimension_numbers<[1], [0], [0], [1], [0, 0, 1, 1], [], []>} : vector<36x8xf32>, vector<8x8xf32>, vector<36x8xf32> -> vector<36x8xf32>
    %c2_149 = arith.constant 2 : index
    %c0_150 = arith.constant 0 : index
    %136 = vector.load %arg5[%c2_149, %c0_150] : memref<3x8xf32, #tpu.memory_space<vmem>>, vector<1x8xf32>
    %137 = vector.broadcast %136 : vector<1x8xf32> to vector<36x8xf32>
    %138 = arith.addf %135, %137 : vector<36x8xf32>
    %c5_151 = arith.constant 5 : index
    %c0_152 = arith.constant 0 : index
    %139 = vector.load %arg7[%c5_151, %c0_152] : memref<48x8xf32, #tpu.memory_space<vmem>>, vector<36x8xf32>
    %c72_153 = arith.constant 72 : index
    %c0_154 = arith.constant 0 : index
    %140 = vector.load %arg4[%c72_153, %c0_154] : memref<96x8xf32, #tpu.memory_space<vmem>>, vector<8x8xf32>
    %cst_155 = arith.constant dense<0.000000e+00> : vector<36x8xf32>
    %141 = tpu.matmul %139, %140, %cst_155 {dimension_numbers = #tpu.dot_dimension_numbers<[1], [0], [0], [1], [0, 0, 1, 1], [], []>} : vector<36x8xf32>, vector<8x8xf32>, vector<36x8xf32> -> vector<36x8xf32>
    %142 = arith.addf %138, %141 : vector<36x8xf32>
    %c7_156 = arith.constant 7 : index
    %c0_157 = arith.constant 0 : index
    %143 = vector.load %arg7[%c7_156, %c0_157] : memref<48x8xf32, #tpu.memory_space<vmem>>, vector<36x8xf32>
    %c80_158 = arith.constant 80 : index
    %c0_159 = arith.constant 0 : index
    %144 = vector.load %arg4[%c80_158, %c0_159] : memref<96x8xf32, #tpu.memory_space<vmem>>, vector<8x8xf32>
    %cst_160 = arith.constant dense<0.000000e+00> : vector<36x8xf32>
    %145 = tpu.matmul %143, %144, %cst_160 {dimension_numbers = #tpu.dot_dimension_numbers<[1], [0], [0], [1], [0, 0, 1, 1], [], []>} : vector<36x8xf32>, vector<8x8xf32>, vector<36x8xf32> -> vector<36x8xf32>
    %146 = arith.addf %142, %145 : vector<36x8xf32>
    %c9_161 = arith.constant 9 : index
    %c0_162 = arith.constant 0 : index
    %147 = vector.load %arg7[%c9_161, %c0_162] : memref<48x8xf32, #tpu.memory_space<vmem>>, vector<36x8xf32>
    %c88_163 = arith.constant 88 : index
    %c0_164 = arith.constant 0 : index
    %148 = vector.load %arg4[%c88_163, %c0_164] : memref<96x8xf32, #tpu.memory_space<vmem>>, vector<8x8xf32>
    %cst_165 = arith.constant dense<0.000000e+00> : vector<36x8xf32>
    %149 = tpu.matmul %147, %148, %cst_165 {dimension_numbers = #tpu.dot_dimension_numbers<[1], [0], [0], [1], [0, 0, 1, 1], [], []>} : vector<36x8xf32>, vector<8x8xf32>, vector<36x8xf32> -> vector<36x8xf32>
    %150 = arith.addf %146, %149 : vector<36x8xf32>
    %c0_166 = arith.constant 0 : index
    %c0_167 = arith.constant 0 : index
    %c0_168 = arith.constant 0 : index
    %151 = vector.load %arg6[%c0_166, %c0_167, %c0_168] : memref<1x36x8xf32, #tpu.memory_space<vmem>>, vector<1x36x8xf32>
    %152 = vector.shape_cast %151 : vector<1x36x8xf32> to vector<36x8xf32>
    %153 = vector.shape_cast %150 : vector<36x8xf32> to vector<1x36x8xf32>
    tpu.vector_store %arg6[%c0_166, %c0_167, %c0_168], %153 {strides = array<i32>} : memref<1x36x8xf32, #tpu.memory_space<vmem>>, vector<1x36x8xf32>,
    return
  }
  func.func @transform_0(%arg0: i32) -> (i32, i32, i32) {
    %c0_i32 = arith.constant 0 : i32
    %c0_i32_0 = arith.constant 0 : i32
    %c0_i32_1 = arith.constant 0 : i32
    return %arg0, %c0_i32, %c0_i32_0 : i32, i32, i32
  }
  func.func @transform_1(%arg0: i32) -> (i32, i32) {
    %c0_i32 = arith.constant 0 : i32
    %c0_i32_0 = arith.constant 0 : i32
    %c0_i32_1 = arith.constant 0 : i32
    return %c0_i32, %c0_i32_0 : i32, i32
  }
  func.func @transform_2(%arg0: i32) -> (i32, i32) {
    %c0_i32 = arith.constant 0 : i32
    %c0_i32_0 = arith.constant 0 : i32
    %c0_i32_1 = arith.constant 0 : i32
    return %c0_i32, %c0_i32_0 : i32, i32
  }
  func.func @transform_3(%arg0: i32) -> (i32, i32) {
    %c0_i32 = arith.constant 0 : i32
    %c0_i32_0 = arith.constant 0 : i32
    %c0_i32_1 = arith.constant 0 : i32
    return %c0_i32, %c0_i32_0 : i32, i32
  }
  func.func @transform_4(%arg0: i32) -> (i32, i32) {
    %c0_i32 = arith.constant 0 : i32
    %c0_i32_0 = arith.constant 0 : i32
    %c0_i32_1 = arith.constant 0 : i32
    return %c0_i32, %c0_i32_0 : i32, i32
  }
  func.func @transform_5(%arg0: i32) -> (i32, i32, i32) {
    %c0_i32 = arith.constant 0 : i32
    %c0_i32_0 = arith.constant 0 : i32
    %c0_i32_1 = arith.constant 0 : i32
    return %arg0, %c0_i32, %c0_i32_0 : i32, i32, i32
  }
}

</mosaic_0001>

<llo_original>
// kernel: idcnn_forward.1
$region0: #{idcnn_forward.1}
  #allocation0 [shape = 'u32[]', space=smem, size = 0x4, offset = 0x4, fixed_abs, tag = 'smem constant byte address 0x4 - core index']
  #allocation1 [shape = 'u32[72,128]{1,0:T(1,128)}', space=vmem, size = 0x9000, scoped, tag = 'internal scratch']
  #allocation2 [shape = 'f32[48,8]{1,0:T(8,128)}', space=vmem, size = 0x6000, scoped, tag = 'scratch operand']
  %s0 = inlined_call_operand.vmem [shape: f32[2,8,16], index: 0, kind: input, shape index: {}]
  %s1 = inlined_call_operand.vmem [shape: f32[16,8], index: 1, kind: input, shape index: {}]
  %s2 = inlined_call_operand.vmem [shape: f32[1,8], index: 2, kind: input, shape index: {}]
  %s3 = inlined_call_operand.vmem [shape: f32[96,8], index: 3, kind: input, shape index: {}]
  %s4 = inlined_call_operand.vmem [shape: f32[3,8], index: 4, kind: input, shape index: {}]
  %s5 = inlined_call_operand.vmem [shape: f32[2,36,8], index: 5, kind: output, shape index: {}]
  %s6 = sld [smem:[#allocation0]]
  $region53: #{idcnn_forward.1} parent=0
    _
  %s8 = ssub.s32 1, %s6
  %s9 = scalar_select 0, %s8, %s6
  loop: start=0, step=1, limit=4
  $region2: #{idcnn_forward.1} parent=0 // loop_pre_header
    _
  $region3: #{idcnn_forward.1} parent=0 // loop_header
    %s11 = sphi 0, %s15
    %p12 = scmp.ge.s32.totalorder %s11, 4
    %s21 = sphi 0, %s23
    %s24 = sphi 0, %s21
    %s25 = sphi 0, %s24
    %s41 = sphi 0, %s25
    %s45 = sphi 0, %s45
    %s47 = sphi 0, %s45
    %s48 = sphi 0, %s47
    %s62 = sphi 0, %s48
    %s66 = sphi 0, %s66
    %s68 = sphi 0, %s66
    %s69 = sphi 0, %s68
    %s83 = sphi 0, %s69
    %s87 = sphi 0, %s87
    %s89 = sphi 0, %s87
    %s90 = sphi 0, %s89
    %s104 = sphi 0, %s90
    %s108 = sphi 0, %s108
    %s110 = sphi 0, %s108
    %s111 = sphi 0, %s110
    %s125 = sphi 0, %s111
    %s131 = sphi 0, %s133
    %s134 = sphi 0, %s131
    %s135 = sphi 0, %s134
    %s151 = sphi 0, %s135
  $region4: #{idcnn_forward.1} parent=0 // loop_header_branch
    %14 = sbr.rel (%p12) target = $region8
  $region5: #{idcnn_forward.1} parent=0 // loop_body
    %s16 = ssub.s32 %s11, 1
    %s17 = ssub.s32 %s11, 2
    %s18 = sadd.s32 %s11, 1
    %s19 = ssub.s32 %s11, %s18
    %p20 = scmp.eq.s32.totalorder %s19, 0
    %s22 = sadd.s32 %s21, 1
    %s23 = scalar_select %p20, %s21, %s22
    %p26 = pneg %p20
    %p27 = scmp.eq.s32.totalorder %s11, 1
    %p28 = por %p26, %p27
    %p29 = scmp.ne.s32.totalorder %s21, %s24
    %p30 = scmp.eq.s32.totalorder %s11, 0
    %p31 = por %p29, %p30
    %p32 = scmp.ne.s32.totalorder %s21, %s24
    %p33 = scmp.eq.s32.totalorder %s16, 1
    %p34 = por %p32, %p33
    %p35 = scmp.ne.s32.totalorder %s24, %s25
    %p36 = scmp.eq.s32.totalorder %s16, 0
    %p37 = por %p35, %p36
    %p38 = scmp.ne.s32.totalorder %s24, %s25
    %p39 = scmp.eq.s32.totalorder %s17, 1
    %p40 = por %p38, %p39
    %p42 = scmp.ne.s32.totalorder %s25, %s41
    %p43 = scmp.eq.s32.totalorder %s17, 0
    %p44 = por %p42, %p43
    %s46 = sadd.s32 %s45, 1
    %p49 = scmp.eq.s32.totalorder %s11, 1
    %p50 = scmp.ne.s32.totalorder %s45, %s47
    %p51 = scmp.eq.s32.totalorder %s11, 0
    %p52 = por %p50, %p51
    %p53 = scmp.ne.s32.totalorder %s45, %s47
    %p54 = scmp.eq.s32.totalorder %s16, 1
    %p55 = por %p53, %p54
    %p56 = scmp.ne.s32.totalorder %s47, %s48
    %p57 = scmp.eq.s32.totalorder %s16, 0
    %p58 = por %p56, %p57
    %p59 = scmp.ne.s32.totalorder %s47, %s48
    %p60 = scmp.eq.s32.totalorder %s17, 1
    %p61 = por %p59, %p60
    %p63 = scmp.ne.s32.totalorder %s48, %s62
    %p64 = scmp.eq.s32.totalorder %s17, 0
    %p65 = por %p63, %p64
    %s67 = sadd.s32 %s66, 1
    %p70 = scmp.eq.s32.totalorder %s11, 1
    %p71 = scmp.ne.s32.totalorder %s66, %s68
    %p72 = scmp.eq.s32.totalorder %s11, 0
    %p73 = por %p71, %p72
    %p74 = scmp.ne.s32.totalorder %s66, %s68
    %p75 = scmp.eq.s32.totalorder %s16, 1
    %p76 = por %p74, %p75
    %p77 = scmp.ne.s32.totalorder %s68, %s69
    %p78 = scmp.eq.s32.totalorder %s16, 0
    %p79 = por %p77, %p78
    %p80 = scmp.ne.s32.totalorder %s68, %s69
    %p81 = scmp.eq.s32.totalorder %s17, 1
    %p82 = por %p80, %p81
    %p84 = scmp.ne.s32.totalorder %s69, %s83
    %p85 = scmp.eq.s32.totalorder %s17, 0
    %p86 = por %p84, %p85
    %s88 = sadd.s32 %s87, 1
    %p91 = scmp.eq.s32.totalorder %s11, 1
    %p92 = scmp.ne.s32.totalorder %s87, %s89
    %p93 = scmp.eq.s32.totalorder %s11, 0
    %p94 = por %p92, %p93
    %p95 = scmp.ne.s32.totalorder %s87, %s89
    %p96 = scmp.eq.s32.totalorder %s16, 1
    %p97 = por %p95, %p96
    %p98 = scmp.ne.s32.totalorder %s89, %s90
    %p99 = scmp.eq.s32.totalorder %s16, 0
    %p100 = por %p98, %p99
    %p101 = scmp.ne.s32.totalorder %s89, %s90
    %p102 = scmp.eq.s32.totalorder %s17, 1
    %p103 = por %p101, %p102
    %p105 = scmp.ne.s32.totalorder %s90, %s104
    %p106 = scmp.eq.s32.totalorder %s17, 0
    %p107 = por %p105, %p106
    %s109 = sadd.s32 %s108, 1
    %p112 = scmp.eq.s32.totalorder %s11, 1
    %p113 = scmp.ne.s32.totalorder %s108, %s110
    %p114 = scmp.eq.s32.totalorder %s11, 0
    %p115 = por %p113, %p114
    %p116 = scmp.ne.s32.totalorder %s108, %s110
    %p117 = scmp.eq.s32.totalorder %s16, 1
    %p118 = por %p116, %p117
    %p119 = scmp.ne.s32.totalorder %s110, %s111
    %p120 = scmp.eq.s32.totalorder %s16, 0
    %p121 = por %p119, %p120
    %p122 = scmp.ne.s32.totalorder %s110, %s111
    %p123 = scmp.eq.s32.totalorder %s17, 1
    %p124 = por %p122, %p123
    %p126 = scmp.ne.s32.totalorder %s111, %s125
    %p127 = scmp.eq.s32.totalorder %s17, 0
    %p128 = por %p126, %p127
    %s129 = ssub.s32 %s11, %s18
    %p130 = scmp.eq.s32.totalorder %s129, 0
    %s132 = sadd.s32 %s131, 1
    %s133 = scalar_select %p130, %s131, %s132
    %p136 = pneg %p130
    %p137 = scmp.eq.s32.totalorder %s11, 1
    %p138 = por %p136, %p137
    %p139 = scmp.ne.s32.totalorder %s131, %s134
    %p140 = scmp.eq.s32.totalorder %s11, 0
    %p141 = por %p139, %p140
    %p142 = scmp.ne.s32.totalorder %s131, %s134
    %p143 = scmp.eq.s32.totalorder %s16, 1
    %p144 = por %p142, %p143
    %p145 = scmp.ne.s32.totalorder %s134, %s135
    %p146 = scmp.eq.s32.totalorder %s16, 0
    %p147 = por %p145, %p146
    %p148 = scmp.ne.s32.totalorder %s134, %s135
    %p149 = scmp.eq.s32.totalorder %s17, 1
    %p150 = por %p148, %p149
    %p152 = scmp.ne.s32.totalorder %s135, %s151
    %p153 = scmp.eq.s32.totalorder %s17, 0
    %p154 = por %p152, %p153
    %p155 = scmp.le.s32.totalorder 1, %s11
    %p156 = scmp.lt.s32.totalorder %s11, 3
    %p157 = pnand %p155, %p156
    %p158 = pneg %p157
    // Predicated region
    $region9: #{idcnn_forward.1} parent=5 // pred_check
      _
    $region10: #{idcnn_forward.1} parent=5 // pred_check_branch
      %160 = sbr.rel (%p157) target = $region12
    $region11: #{idcnn_forward.1} parent=5 // pred_region
      %s161 = ssub.s32 %s11, 1
      // Predicated region
      $region13: #{idcnn_forward.1} parent=11 // pred_check
        %p162 = pneg %p58
      $region14: #{idcnn_forward.1} parent=11 // pred_check_branch
        %164 = sbr.rel (%p162) target = $region16
      $region15: #{idcnn_forward.1} parent=11 // pred_region
        _
      $region16: #{idcnn_forward.1} parent=11 // pred_fallthru
        _
      // Predicated region
      $region17: #{idcnn_forward.1} parent=11 // pred_check
        %p165 = pneg %p79
      $region18: #{idcnn_forward.1} parent=11 // pred_check_branch
        %167 = sbr.rel (%p165) target = $region20
      $region19: #{idcnn_forward.1} parent=11 // pred_region
        _
      $region20: #{idcnn_forward.1} parent=11 // pred_fallthru
        _
      // Predicated region
      $region21: #{idcnn_forward.1} parent=11 // pred_check
        %p168 = pneg %p100
      $region22: #{idcnn_forward.1} parent=11 // pred_check_branch
        %170 = sbr.rel (%p168) target = $region24
      $region23: #{idcnn_forward.1} parent=11 // pred_region
        _
      $region24: #{idcnn_forward.1} parent=11 // pred_fallthru
        _
      // Predicated region
      $region25: #{idcnn_forward.1} parent=11 // pred_check
        %p171 = pneg %p121
      $region26: #{idcnn_forward.1} parent=11 // pred_check_branch
        %173 = sbr.rel (%p171) target = $region28
      $region27: #{idcnn_forward.1} parent=11 // pred_region
        _
      $region28: #{idcnn_forward.1} parent=11 // pred_fallthru
        _
    $region12: #{idcnn_forward.1} parent=5 // pred_fallthru
      _
    %p174 = scmp.lt.s32.totalorder %s11, 2
    // Predicated region
    $region29: #{idcnn_forward.1} parent=5 // pred_check
      %p175 = pneg %p174
    $region30: #{idcnn_forward.1} parent=5 // pred_check_branch
      %177 = sbr.rel (%p175) target = $region32
    $region31: #{idcnn_forward.1} parent=5 // pred_region
      // Predicated region
      $region33: #{idcnn_forward.1} parent=31 // pred_check
        %p178 = pneg %p31
      $region34: #{idcnn_forward.1} parent=31 // pred_check_branch
        %180 = sbr.rel (%p178) target = $region36
      $region35: #{idcnn_forward.1} parent=31 // pred_region
        %p181 = scmp.lt.s32.totalorder %s11, 1
        %s182 = scalar_select %p181, %s11, 1
        %s183 = smul.addr %s182, 8
        %s184 = scalar_lea.vmem %s0, %s183
      $region36: #{idcnn_forward.1} parent=31 // pred_fallthru
        _
    $region32: #{idcnn_forward.1} parent=5 // pred_fallthru
      _
    %p185 = scmp.le.s32.totalorder 1, %s11
    %p186 = scmp.lt.s32.totalorder %s11, 3
    %p187 = pnand %p185, %p186
    %p188 = pneg %p187
    // Predicated region
    $region37: #{idcnn_forward.1} parent=5 // pred_check
      _
    $region38: #{idcnn_forward.1} parent=5 // pred_check_branch
      %190 = sbr.rel (%p187) target = $region40
    $region39: #{idcnn_forward.1} parent=5 // pred_region
      %s191 = ssub.s32 %s11, 1
      %p192 = scmp.lt.s32.totalorder %s16, 1
      %s193 = scalar_select %p192, %s16, 1
      %s194 = smul.addr %s193, 8
      %s195 = scalar_lea.vmem %s0, %s194
      %p196 = pneg %p37
      %p197 = pneg %p34
      %p198 = pneg %p58
      %p199 = pneg %p55
      %p200 = pneg %p79
      %p201 = pneg %p76
      %p202 = pneg %p100
      %p203 = pneg %p97
      %p204 = pneg %p121
      %p205 = pneg %p118
      %p206 = pneg %p147
      %p207 = pneg %p144
      %p208 = scmp.lt.s32.totalorder %s16, 1
      %s209 = scalar_select %p208, %s16, 1
      %s210 = smul.addr %s209, 5
      %s211 = smul.addr %s210, 8
      %s212 = scalar_lea.vmem %s5, %s211
      %p213 = scmp.lt.s32.totalorder %s16, 1
      %s214 = scalar_select %p213, %s16, 1
      %s215 = smul.addr %s214, 8
      %s216 = scalar_lea.vmem %s0, %s215
      %p217 = scmp.lt.s32.totalorder %s16, 1
      %s218 = scalar_select %p217, %s16, 1
      %s219 = smul.addr %s218, 5
      %s220 = smul.addr %s219, 8
      %s221 = scalar_lea.vmem %s5, %s220
      %v222 = vld [vmem:[%s216] sm:$0xff]
      %v223 = vld [vmem:[%s1] sm:$0xff]
      %v224 = vld [vmem:[%s1 + $0x8] sm:$0xff]
      %v225 = vld [vmem:[%s2] sm:$0x1]
      %v227 = vperm.slane %v225, 0
      %vm229 = vcmask 130048
      %v231 = vsel %vm229, %v222, 0
      %233 = vmatpush.msra.mxu0 0.0
      %234 = vmatpush.msra.mxu0 0.0
      %235 = vmatpush.msra.mxu0 0.0
      %236 = vmatpush.msra.mxu0 0.0
      %237 = vmatpush.msra.mxu0 0.0
      %238 = vmatpush.msra.mxu0 0.0
      %239 = vmatpush.msra.mxu0 0.0
      %240 = vmatpush.msra.mxu0 0.0
      %241 = vmatpush.msra.mxu0 0.0
      %242 = vmatpush.msra.mxu0 0.0
      %243 = vmatpush.msra.mxu0 0.0
      %244 = vmatpush.msra.mxu0 0.0
      %245 = vmatpush.msra.mxu0 0.0
      %246 = vmatpush.msra.mxu0 0.0
      %247 = vmatpush.msra.mxu0 %v224
      %248 = vmatpush.msra.mxu0 %v223
      %249 = vmatmul.f32.gmra.mxu0 %v231
      %v250 = vpop.f32.mrf.mxu0
      %v251 = vadd.f32 %v227, %v250
      %252 = vdwg.mxu0
      %vm253 = vcmask 60416
      %254 = vst.msk [vmem:[#allocation2 + $0x4] sm:$0xf] %vm253, 0.0
      %255 = vst.msk [vmem:[#allocation2 + $0x10] sm:$0xf] %vm253, 0.0
      %vm256 = vcmask 64512
      %257 = vst.msk [vmem:[#allocation2 + $0x8] sm:$0xff] %vm256, %v251
      %v258 = vld [vmem:[#allocation2 + $0x4] sm:$0xff]
      %v259 = vld [vmem:[#allocation2 + $0xc] sm:$0x1f]
      %v260 = vld [vmem:[%s3] sm:$0xff]
      %v261 = vld [vmem:[%s4] sm:$0x1]
      %v262 = vperm.slane %v261, 0
      %v264 = vsel %vm256, %v258, 0
      %v267 = vsel %vm256, %v259, 0
      %269 = vmatpush.msra.mxu0 0.0
      %270 = vmatpush.msra.mxu0 0.0
      %271 = vmatpush.msra.mxu0 0.0
      %272 = vmatpush.msra.mxu0 0.0
      %273 = vmatpush.msra.mxu0 0.0
      %274 = vmatpush.msra.mxu0 0.0
      %275 = vmatpush.msra.mxu0 0.0
      %276 = vmatpush.msra.mxu0 0.0
      %277 = vmatpush.msra.mxu0 0.0
      %278 = vmatpush.msra.mxu0 0.0
      %279 = vmatpush.msra.mxu0 0.0
      %280 = vmatpush.msra.mxu0 0.0
      %281 = vmatpush.msra.mxu0 0.0
      %282 = vmatpush.msra.mxu0 0.0
      %283 = vmatpush.msra.mxu0 0.0
      %284 = vmatpush.msra.mxu0 %v260
      %285 = vmatmul.f32.gmra.mxu0 %v264
      %v286 = vpop.f32.mrf.mxu0
      %v287 = vadd.f32 %v262, %v286
      %288 = vmatmul.f32.gmra.mxu0 %v267
      %v289 = vpop.f32.mrf.mxu0
      %v290 = vadd.f32 %v262, %v289
      %291 = vdwg.mxu0
      %v292 = vld [vmem:[#allocation2 + $0x5] sm:$0xff]
      %v293 = vld [vmem:[#allocation2 + $0xd] sm:$0x1f]
      %v294 = vld [vmem:[%s3 + $0x8] sm:$0xff]
      %v296 = vsel %vm256, %v292, 0
      %v299 = vsel %vm256, %v293, 0
      %301 = vmatpush.msra.mxu0 0.0
      %302 = vmatpush.msra.mxu0 0.0
      %303 = vmatpush.msra.mxu0 0.0
      %304 = vmatpush.msra.mxu0 0.0
      %305 = vmatpush.msra.mxu0 0.0
      %306 = vmatpush.msra.mxu0 0.0
      %307 = vmatpush.msra.mxu0 0.0
      %308 = vmatpush.msra.mxu0 0.0
      %309 = vmatpush.msra.mxu0 0.0
      %310 = vmatpush.msra.mxu0 0.0
      %311 = vmatpush.msra.mxu0 0.0
      %312 = vmatpush.msra.mxu0 0.0
      %313 = vmatpush.msra.mxu0 0.0
      %314 = vmatpush.msra.mxu0 0.0
      %315 = vmatpush.msra.mxu0 0.0
      %316 = vmatpush.msra.mxu0 %v294
      %317 = vmatmul.f32.gmra.mxu0 %v296
      %v318 = vpop.f32.mrf.mxu0
      %v319 = vadd.f32 0.0, %v318
      %320 = vmatmul.f32.gmra.mxu0 %v299
      %v321 = vpop.f32.mrf.mxu0
      %v322 = vadd.f32 0.0, %v321
      %323 = vdwg.mxu0
      %v324 = vadd.f32 %v287, %v319
      %v325 = vadd.f32 %v290, %v322
      %v326 = vld [vmem:[#allocation2 + $0x6] sm:$0xff]
      %v327 = vld [vmem:[#allocation2 + $0xe] sm:$0x1f]
      %v328 = vld [vmem:[%s3 + $0x10] sm:$0xff]
      %v330 = vsel %vm256, %v326, 0
      %v333 = vsel %vm256, %v327, 0
      %335 = vmatpush.msra.mxu0 0.0
      %336 = vmatpush.msra.mxu0 0.0
      %337 = vmatpush.msra.mxu0 0.0
      %338 = vmatpush.msra.mxu0 0.0
      %339 = vmatpush.msra.mxu0 0.0
      %340 = vmatpush.msra.mxu0 0.0
      %341 = vmatpush.msra.mxu0 0.0
      %342 = vmatpush.msra.mxu0 0.0
      %343 = vmatpush.msra.mxu0 0.0
      %344 = vmatpush.msra.mxu0 0.0
      %345 = vmatpush.msra.mxu0 0.0
      %346 = vmatpush.msra.mxu0 0.0
      %347 = vmatpush.msra.mxu0 0.0
      %348 = vmatpush.msra.mxu0 0.0
      %349 = vmatpush.msra.mxu0 0.0
      %350 = vmatpush.msra.mxu0 %v328
      %351 = vmatmul.f32.gmra.mxu0 %v330
      %v352 = vpop.f32.mrf.mxu0
      %v353 = vadd.f32 0.0, %v352
      %354 = vmatmul.f32.gmra.mxu0 %v333
      %v355 = vpop.f32.mrf.mxu0
      %v356 = vadd.f32 0.0, %v355
      %357 = vdwg.mxu0
      %v358 = vadd.f32 %v324, %v353
      %v359 = vadd.f32 %v325, %v356
      %v360 = vld [vmem:[#allocation2 + $0x7] sm:$0xff]
      %v361 = vld [vmem:[#allocation2 + $0xf] sm:$0x1f]
      %v362 = vld [vmem:[%s3 + $0x18] sm:$0xff]
      %v364 = vsel %vm256, %v360, 0
      %v367 = vsel %vm256, %v361, 0
      %369 = vmatpush.msra.mxu0 0.0
      %370 = vmatpush.msra.mxu0 0.0
      %371 = vmatpush.msra.mxu0 0.0
      %372 = vmatpush.msra.mxu0 0.0
      %373 = vmatpush.msra.mxu0 0.0
      %374 = vmatpush.msra.mxu0 0.0
      %375 = vmatpush.msra.mxu0 0.0
      %376 = vmatpush.msra.mxu0 0.0
      %377 = vmatpush.msra.mxu0 0.0
      %378 = vmatpush.msra.mxu0 0.0
      %379 = vmatpush.msra.mxu0 0.0
      %380 = vmatpush.msra.mxu0 0.0
      %381 = vmatpush.msra.mxu0 0.0
      %382 = vmatpush.msra.mxu0 0.0
      %383 = vmatpush.msra.mxu0 0.0
      %384 = vmatpush.msra.mxu0 %v362
      %385 = vmatmul.f32.gmra.mxu0 %v364
      %v386 = vpop.f32.mrf.mxu0
      %v387 = vadd.f32 0.0, %v386
      %388 = vmatmul.f32.gmra.mxu0 %v367
      %v389 = vpop.f32.mrf.mxu0
      %v390 = vadd.f32 0.0, %v389
      %391 = vdwg.mxu0
      %v392 = vadd.f32 %v358, %v387
      %v393 = vadd.f32 %v359, %v390
      %v394 = vmax.f32 %v392, 0.0
      %v395 = vmax.f32 %v393, 0.0
      %396 = vst.msk [vmem:[#allocation2 + $0x4] sm:$0xf] %vm253, 0.0
      %397 = vst.msk [vmem:[#allocation2 + $0x15] sm:$0xf] %vm253, 0.0
      %398 = vst.msk [vmem:[#allocation2 + $0x8] sm:$0xff] %vm256, %v394
      %vm399 = vcmask 61440
      %400 = vst.msk [vmem:[#allocation2 + $0x10] sm:$0x1f] %vm399, %v395
      %v401 = vld [vmem:[#allocation2 + $0x4] sm:$0xff]
      %v402 = vld [vmem:[#allocation2 + $0xc] sm:$0xff]
      %v403 = vld [vmem:[#allocation2 + $0x14] sm:$0x3]
      %v404 = vld [vmem:[%s3 + $0x20] sm:$0xff]
      %v405 = vld [vmem:[%s4 + $0x1] sm:$0x1]
      %v406 = vperm.slane %v405, 0
      %v408 = vsel %vm256, %v401, 0
      %v411 = vsel %vm256, %v402, 0
      %v414 = vsel %vm256, %v403, 0
      %416 = vmatpush.msra.mxu0 0.0
      %417 = vmatpush.msra.mxu0 0.0
      %418 = vmatpush.msra.mxu0 0.0
      %419 = vmatpush.msra.mxu0 0.0
      %420 = vmatpush.msra.mxu0 0.0
      %421 = vmatpush.msra.mxu0 0.0
      %422 = vmatpush.msra.mxu0 0.0
      %423 = vmatpush.msra.mxu0 0.0
      %424 = vmatpush.msra.mxu0 0.0
      %425 = vmatpush.msra.mxu0 0.0
      %426 = vmatpush.msra.mxu0 0.0
      %427 = vmatpush.msra.mxu0 0.0
      %428 = vmatpush.msra.mxu0 0.0
      %429 = vmatpush.msra.mxu0 0.0
      %430 = vmatpush.msra.mxu0 0.0
      %431 = vmatpush.msra.mxu0 %v404
      %432 = vmatmul.f32.gmra.mxu0 %v408
      %v433 = vpop.f32.mrf.mxu0
      %v434 = vadd.f32 %v406, %v433
      %435 = vmatmul.f32.gmra.mxu0 %v411
      %v436 = vpop.f32.mrf.mxu0
      %v437 = vadd.f32 %v406, %v436
      %438 = vmatmul.f32.gmra.mxu0 %v414
      %v439 = vpop.f32.mrf.mxu0
      %v440 = vadd.f32 %v406, %v439
      %441 = vdwg.mxu0
      %v442 = vld [vmem:[#allocation2 + $0x5] sm:$0xff]
      %v443 = vld [vmem:[#allocation2 + $0xd] sm:$0xff]
      %v444 = vld [vmem:[#allocation2 + $0x15] sm:$0x3]
      %v445 = vld [vmem:[%s3 + $0x28] sm:$0xff]
      %v447 = vsel %vm256, %v442, 0
      %v450 = vsel %vm256, %v443, 0
      %v453 = vsel %vm256, %v444, 0
      %455 = vmatpush.msra.mxu0 0.0
      %456 = vmatpush.msra.mxu0 0.0
      %457 = vmatpush.msra.mxu0 0.0
      %458 = vmatpush.msra.mxu0 0.0
      %459 = vmatpush.msra.mxu0 0.0
      %460 = vmatpush.msra.mxu0 0.0
      %461 = vmatpush.msra.mxu0 0.0
      %462 = vmatpush.msra.mxu0 0.0
      %463 = vmatpush.msra.mxu0 0.0
      %464 = vmatpush.msra.mxu0 0.0
      %465 = vmatpush.msra.mxu0 0.0
      %466 = vmatpush.msra.mxu0 0.0
      %467 = vmatpush.msra.mxu0 0.0
      %468 = vmatpush.msra.mxu0 0.0
      %469 = vmatpush.msra.mxu0 0.0
      %470 = vmatpush.msra.mxu0 %v445
      %471 = vmatmul.f32.gmra.mxu0 %v447
      %v472 = vpop.f32.mrf.mxu0
      %v473 = vadd.f32 0.0, %v472
      %474 = vmatmul.f32.gmra.mxu0 %v450
      %v475 = vpop.f32.mrf.mxu0
      %v476 = vadd.f32 0.0, %v475
      %477 = vmatmul.f32.gmra.mxu0 %v453
      %v478 = vpop.f32.mrf.mxu0
      %v479 = vadd.f32 0.0, %v478
      %480 = vdwg.mxu0
      %v481 = vadd.f32 %v434, %v473
      %v482 = vadd.f32 %v437, %v476
      %v483 = vadd.f32 %v440, %v479
      %v484 = vld [vmem:[#allocation2 + $0x6] sm:$0xff]
      %v485 = vld [vmem:[#allocation2 + $0xe] sm:$0xff]
      %v486 = vld [vmem:[#allocation2 + $0x16] sm:$0x3]
      %v487 = vld [vmem:[%s3 + $0x30] sm:$0xff]
      %v489 = vsel %vm256, %v484, 0
      %v492 = vsel %vm256, %v485, 0
      %v495 = vsel %vm256, %v486, 0
      %497 = vmatpush.msra.mxu0 0.0
      %498 = vmatpush.msra.mxu0 0.0
      %499 = vmatpush.msra.mxu0 0.0
      %500 = vmatpush.msra.mxu0 0.0
      %501 = vmatpush.msra.mxu0 0.0
      %502 = vmatpush.msra.mxu0 0.0
      %503 = vmatpush.msra.mxu0 0.0
      %504 = vmatpush.msra.mxu0 0.0
      %505 = vmatpush.msra.mxu0 0.0
      %506 = vmatpush.msra.mxu0 0.0
      %507 = vmatpush.msra.mxu0 0.0
      %508 = vmatpush.msra.mxu0 0.0
      %509 = vmatpush.msra.mxu0 0.0
      %510 = vmatpush.msra.mxu0 0.0
      %511 = vmatpush.msra.mxu0 0.0
      %512 = vmatpush.msra.mxu0 %v487
      %513 = vmatmul.f32.gmra.mxu0 %v489
      %v514 = vpop.f32.mrf.mxu0
      %v515 = vadd.f32 0.0, %v514
      %516 = vmatmul.f32.gmra.mxu0 %v492
      %v517 = vpop.f32.mrf.mxu0
      %v518 = vadd.f32 0.0, %v517
      %519 = vmatmul.f32.gmra.mxu0 %v495
      %v520 = vpop.f32.mrf.mxu0
      %v521 = vadd.f32 0.0, %v520
      %522 = vdwg.mxu0
      %v523 = vadd.f32 %v481, %v515
      %v524 = vadd.f32 %v482, %v518
      %v525 = vadd.f32 %v483, %v521
      %v526 = vld [vmem:[#allocation2 + $0x7] sm:$0xff]
      %v527 = vld [vmem:[#allocation2 + $0xf] sm:$0xff]
      %v528 = vld [vmem:[#allocation2 + $0x17] sm:$0x3]
      %v529 = vld [vmem:[%s3 + $0x38] sm:$0xff]
      %v531 = vsel %vm256, %v526, 0
      %v534 = vsel %vm256, %v527, 0
      %v537 = vsel %vm256, %v528, 0
      %539 = vmatpush.msra.mxu0 0.0
      %540 = vmatpush.msra.mxu0 0.0
      %541 = vmatpush.msra.mxu0 0.0
      %542 = vmatpush.msra.mxu0 0.0
      %543 = vmatpush.msra.mxu0 0.0
      %544 = vmatpush.msra.mxu0 0.0
      %545 = vmatpush.msra.mxu0 0.0
      %546 = vmatpush.msra.mxu0 0.0
      %547 = vmatpush.msra.mxu0 0.0
      %548 = vmatpush.msra.mxu0 0.0
      %549 = vmatpush.msra.mxu0 0.0
      %550 = vmatpush.msra.mxu0 0.0
      %551 = vmatpush.msra.mxu0 0.0
      %552 = vmatpush.msra.mxu0 0.0
      %553 = vmatpush.msra.mxu0 0.0
      %554 = vmatpush.msra.mxu0 %v529
      %555 = vmatmul.f32.gmra.mxu0 %v531
      %v556 = vpop.f32.mrf.mxu0
      %v557 = vadd.f32 0.0, %v556
      %558 = vmatmul.f32.gmra.mxu0 %v534
      %v559 = vpop.f32.mrf.mxu0
      %v560 = vadd.f32 0.0, %v559
      %561 = vmatmul.f32.gmra.mxu0 %v537
      %v562 = vpop.f32.mrf.mxu0
      %v563 = vadd.f32 0.0, %v562
      %564 = vdwg.mxu0
      %v565 = vadd.f32 %v523, %v557
      %v566 = vadd.f32 %v524, %v560
      %v567 = vadd.f32 %v525, %v563
      %568 = vst.msk [vmem:[#allocation2 + $0x3] sm:$0x1f] %vm399, 0.0
      %569 = vst.msk [vmem:[#allocation2 + $0x1a] sm:$0x1f] %vm399, 0.0
      %570 = vst.msk [vmem:[#allocation2 + $0x8] sm:$0xff] %vm256, %v565
      %571 = vst.msk [vmem:[#allocation2 + $0x10] sm:$0xff] %vm256, %v566
      %vm572 = vcmask 58368
      %573 = vst.msk [vmem:[#allocation2 + $0x18] sm:$0x3] %vm572, %v567
      %v574 = vld [vmem:[#allocation2 + $0x3] sm:$0xff]
      %v575 = vld [vmem:[#allocation2 + $0xb] sm:$0xff]
      %v576 = vld [vmem:[#allocation2 + $0x13] sm:$0x3f]
      %v577 = vld [vmem:[%s3 + $0x40] sm:$0xff]
      %v578 = vld [vmem:[%s4 + $0x2] sm:$0x1]
      %v579 = vperm.slane %v578, 0
      %v581 = vsel %vm256, %v574, 0
      %v584 = vsel %vm256, %v575, 0
      %v587 = vsel %vm256, %v576, 0
      %589 = vmatpush.msra.mxu0 0.0
      %590 = vmatpush.msra.mxu0 0.0
      %591 = vmatpush.msra.mxu0 0.0
      %592 = vmatpush.msra.mxu0 0.0
      %593 = vmatpush.msra.mxu0 0.0
      %594 = vmatpush.msra.mxu0 0.0
      %595 = vmatpush.msra.mxu0 0.0
      %596 = vmatpush.msra.mxu0 0.0
      %597 = vmatpush.msra.mxu0 0.0
      %598 = vmatpush.msra.mxu0 0.0
      %599 = vmatpush.msra.mxu0 0.0
      %600 = vmatpush.msra.mxu0 0.0
      %601 = vmatpush.msra.mxu0 0.0
      %602 = vmatpush.msra.mxu0 0.0
      %603 = vmatpush.msra.mxu0 0.0
      %604 = vmatpush.msra.mxu0 %v577
      %605 = vmatmul.f32.gmra.mxu0 %v581
      %v606 = vpop.f32.mrf.mxu0
      %v607 = vadd.f32 %v579, %v606
      %608 = vmatmul.f32.gmra.mxu0 %v584
      %v609 = vpop.f32.mrf.mxu0
      %v610 = vadd.f32 %v579, %v609
      %611 = vmatmul.f32.gmra.mxu0 %v587
      %v612 = vpop.f32.mrf.mxu0
      %v613 = vadd.f32 %v579, %v612
      %614 = vdwg.mxu0
      %v615 = vld [vmem:[#allocation2 + $0x5] sm:$0xff]
      %v616 = vld [vmem:[#allocation2 + $0xd] sm:$0xff]
      %v617 = vld [vmem:[#allocation2 + $0x15] sm:$0x3f]
      %v618 = vld [vmem:[%s3 + $0x48] sm:$0xff]
      %v620 = vsel %vm256, %v615, 0
      %v623 = vsel %vm256, %v616, 0
      %v626 = vsel %vm256, %v617, 0
      %628 = vmatpush.msra.mxu0 0.0
      %629 = vmatpush.msra.mxu0 0.0
      %630 = vmatpush.msra.mxu0 0.0
      %631 = vmatpush.msra.mxu0 0.0
      %632 = vmatpush.msra.mxu0 0.0
      %633 = vmatpush.msra.mxu0 0.0
      %634 = vmatpush.msra.mxu0 0.0
      %635 = vmatpush.msra.mxu0 0.0
      %636 = vmatpush.msra.mxu0 0.0
      %637 = vmatpush.msra.mxu0 0.0
      %638 = vmatpush.msra.mxu0 0.0
      %639 = vmatpush.msra.mxu0 0.0
      %640 = vmatpush.msra.mxu0 0.0
      %641 = vmatpush.msra.mxu0 0.0
      %642 = vmatpush.msra.mxu0 0.0
      %643 = vmatpush.msra.mxu0 %v618
      %644 = vmatmul.f32.gmra.mxu0 %v620
      %v645 = vpop.f32.mrf.mxu0
      %v646 = vadd.f32 0.0, %v645
      %647 = vmatmul.f32.gmra.mxu0 %v623
      %v648 = vpop.f32.mrf.mxu0
      %v649 = vadd.f32 0.0, %v648
      %650 = vmatmul.f32.gmra.mxu0 %v626
      %v651 = vpop.f32.mrf.mxu0
      %v652 = vadd.f32 0.0, %v651
      %653 = vdwg.mxu0
      %v654 = vadd.f32 %v607, %v646
      %v655 = vadd.f32 %v610, %v649
      %v656 = vadd.f32 %v613, %v652
      %v657 = vld [vmem:[#allocation2 + $0x7] sm:$0xff]
      %v658 = vld [vmem:[#allocation2 + $0xf] sm:$0xff]
      %v659 = vld [vmem:[#allocation2 + $0x17] sm:$0x3f]
      %v660 = vld [vmem:[%s3 + $0x50] sm:$0xff]
      %v662 = vsel %vm256, %v657, 0
      %v665 = vsel %vm256, %v658, 0
      %v668 = vsel %vm256, %v659, 0
      %670 = vmatpush.msra.mxu0 0.0
      %671 = vmatpush.msra.mxu0 0.0
      %672 = vmatpush.msra.mxu0 0.0
      %673 = vmatpush.msra.mxu0 0.0
      %674 = vmatpush.msra.mxu0 0.0
      %675 = vmatpush.msra.mxu0 0.0
      %676 = vmatpush.msra.mxu0 0.0
      %677 = vmatpush.msra.mxu0 0.0
      %678 = vmatpush.msra.mxu0 0.0
      %679 = vmatpush.msra.mxu0 0.0
      %680 = vmatpush.msra.mxu0 0.0
      %681 = vmatpush.msra.mxu0 0.0
      %682 = vmatpush.msra.mxu0 0.0
      %683 = vmatpush.msra.mxu0 0.0
      %684 = vmatpush.msra.mxu0 0.0
      %685 = vmatpush.msra.mxu0 %v660
      %686 = vmatmul.f32.gmra.mxu0 %v662
      %v687 = vpop.f32.mrf.mxu0
      %v688 = vadd.f32 0.0, %v687
      %689 = vmatmul.f32.gmra.mxu0 %v665
      %v690 = vpop.f32.mrf.mxu0
      %v691 = vadd.f32 0.0, %v690
      %692 = vmatmul.f32.gmra.mxu0 %v668
      %v693 = vpop.f32.mrf.mxu0
      %v694 = vadd.f32 0.0, %v693
      %695 = vdwg.mxu0
      %v696 = vadd.f32 %v654, %v688
      %v697 = vadd.f32 %v655, %v691
      %v698 = vadd.f32 %v656, %v694
      %v699 = vld [vmem:[#allocation2 + $0x9] sm:$0xff]
      %v700 = vld [vmem:[#allocation2 + $0x11] sm:$0xff]
      %v701 = vld [vmem:[#allocation2 + $0x19] sm:$0x3f]
      %v702 = vld [vmem:[%s3 + $0x58] sm:$0xff]
      %v704 = vsel %vm256, %v699, 0
      %v707 = vsel %vm256, %v700, 0
      %v710 = vsel %vm256, %v701, 0
      %712 = vmatpush.msra.mxu0 0.0
      %713 = vmatpush.msra.mxu0 0.0
      %714 = vmatpush.msra.mxu0 0.0
      %715 = vmatpush.msra.mxu0 0.0
      %716 = vmatpush.msra.mxu0 0.0
      %717 = vmatpush.msra.mxu0 0.0
      %718 = vmatpush.msra.mxu0 0.0
      %719 = vmatpush.msra.mxu0 0.0
      %720 = vmatpush.msra.mxu0 0.0
      %721 = vmatpush.msra.mxu0 0.0
      %722 = vmatpush.msra.mxu0 0.0
      %723 = vmatpush.msra.mxu0 0.0
      %724 = vmatpush.msra.mxu0 0.0
      %725 = vmatpush.msra.mxu0 0.0
      %726 = vmatpush.msra.mxu0 0.0
      %727 = vmatpush.msra.mxu0 %v702
      %728 = vmatmul.f32.gmra.mxu0 %v704
      %v729 = vpop.f32.mrf.mxu0
      %v730 = vadd.f32 0.0, %v729
      %731 = vmatmul.f32.gmra.mxu0 %v707
      %v732 = vpop.f32.mrf.mxu0
      %v733 = vadd.f32 0.0, %v732
      %734 = vmatmul.f32.gmra.mxu0 %v710
      %v735 = vpop.f32.mrf.mxu0
      %v736 = vadd.f32 0.0, %v735
      %737 = vdwg.mxu0
      %v738 = vadd.f32 %v696, %v730
      %v739 = vadd.f32 %v697, %v733
      %v740 = vadd.f32 %v698, %v736
      %v741 = vmax.f32 %v738, 0.0
      %v742 = vmax.f32 %v739, 0.0
      %v743 = vmax.f32 %v740, 0.0
      %744 = vst.msk [vmem:[#allocation2 + $0x4] sm:$0xf] %vm253, 0.0
      %745 = vst.msk [vmem:[#allocation2 + $0x1e] sm:$0xf] %vm253, 0.0
      %746 = vst.msk [vmem:[#allocation2 + $0x8] sm:$0xff] %vm256, %v741
      %747 = vst.msk [vmem:[#allocation2 + $0x10] sm:$0xff] %vm256, %v742
      %vm748 = vcmask 62464
      %749 = vst.msk [vmem:[#allocation2 + $0x18] sm:$0x3f] %vm748, %v743
      %v750 = vld [vmem:[#allocation2 + $0x4] sm:$0xff]
      %v751 = vld [vmem:[#allocation2 + $0xc] sm:$0xff]
      %v752 = vld [vmem:[#allocation2 + $0x14] sm:$0xff]
      %v753 = vld [vmem:[#allocation2 + $0x1c] sm:$0x7]
      %v754 = vld [vmem:[%s3] sm:$0xff]
      %v755 = vld [vmem:[%s4] sm:$0x1]
      %v756 = vperm.slane %v755, 0
      %v758 = vsel %vm256, %v750, 0
      %v761 = vsel %vm256, %v751, 0
      %v764 = vsel %vm256, %v752, 0
      %v767 = vsel %vm256, %v753, 0
      %769 = vmatpush.msra.mxu0 0.0
      %770 = vmatpush.msra.mxu0 0.0
      %771 = vmatpush.msra.mxu0 0.0
      %772 = vmatpush.msra.mxu0 0.0
      %773 = vmatpush.msra.mxu0 0.0
      %774 = vmatpush.msra.mxu0 0.0
      %775 = vmatpush.msra.mxu0 0.0
      %776 = vmatpush.msra.mxu0 0.0
      %777 = vmatpush.msra.mxu0 0.0
      %778 = vmatpush.msra.mxu0 0.0
      %779 = vmatpush.msra.mxu0 0.0
      %780 = vmatpush.msra.mxu0 0.0
      %781 = vmatpush.msra.mxu0 0.0
      %782 = vmatpush.msra.mxu0 0.0
      %783 = vmatpush.msra.mxu0 0.0
      %784 = vmatpush.msra.mxu0 %v754
      %785 = vmatmul.f32.gmra.mxu0 %v758
      %v786 = vpop.f32.mrf.mxu0
      %v787 = vadd.f32 %v756, %v786
      %788 = vmatmul.f32.gmra.mxu0 %v761
      %v789 = vpop.f32.mrf.mxu0
      %v790 = vadd.f32 %v756, %v789
      %791 = vmatmul.f32.gmra.mxu0 %v764
      %v792 = vpop.f32.mrf.mxu0
      %v793 = vadd.f32 %v756, %v792
      %794 = vmatmul.f32.gmra.mxu0 %v767
      %v795 = vpop.f32.mrf.mxu0
      %v796 = vadd.f32 %v756, %v795
      %797 = vdwg.mxu0
      %v798 = vld [vmem:[#allocation2 + $0x5] sm:$0xff]
      %v799 = vld [vmem:[#allocation2 + $0xd] sm:$0xff]
      %v800 = vld [vmem:[#allocation2 + $0x15] sm:$0xff]
      %v801 = vld [vmem:[#allocation2 + $0x1d] sm:$0x7]
      %v802 = vld [vmem:[%s3 + $0x8] sm:$0xff]
      %v804 = vsel %vm256, %v798, 0
      %v807 = vsel %vm256, %v799, 0
      %v810 = vsel %vm256, %v800, 0
      %v813 = vsel %vm256, %v801, 0
      %815 = vmatpush.msra.mxu0 0.0
      %816 = vmatpush.msra.mxu0 0.0
      %817 = vmatpush.msra.mxu0 0.0
      %818 = vmatpush.msra.mxu0 0.0
      %819 = vmatpush.msra.mxu0 0.0
      %820 = vmatpush.msra.mxu0 0.0
      %821 = vmatpush.msra.mxu0 0.0
      %822 = vmatpush.msra.mxu0 0.0
      %823 = vmatpush.msra.mxu0 0.0
      %824 = vmatpush.msra.mxu0 0.0
      %825 = vmatpush.msra.mxu0 0.0
      %826 = vmatpush.msra.mxu0 0.0
      %827 = vmatpush.msra.mxu0 0.0
      %828 = vmatpush.msra.mxu0 0.0
      %829 = vmatpush.msra.mxu0 0.0
      %830 = vmatpush.msra.mxu0 %v802
      %831 = vmatmul.f32.gmra.mxu0 %v804
      %v832 = vpop.f32.mrf.mxu0
      %v833 = vadd.f32 0.0, %v832
      %834 = vmatmul.f32.gmra.mxu0 %v807
      %v835 = vpop.f32.mrf.mxu0
      %v836 = vadd.f32 0.0, %v835
      %837 = vmatmul.f32.gmra.mxu0 %v810
      %v838 = vpop.f32.mrf.mxu0
      %v839 = vadd.f32 0.0, %v838
      %840 = vmatmul.f32.gmra.mxu0 %v813
      %v841 = vpop.f32.mrf.mxu0
      %v842 = vadd.f32 0.0, %v841
      %843 = vdwg.mxu0
      %v844 = vadd.f32 %v787, %v833
      %v845 = vadd.f32 %v790, %v836
      %v846 = vadd.f32 %v793, %v839
      %v847 = vadd.f32 %v796, %v842
      %v848 = vld [vmem:[#allocation2 + $0x6] sm:$0xff]
      %v849 = vld [vmem:[#allocation2 + $0xe] sm:$0xff]
      %v850 = vld [vmem:[#allocation2 + $0x16] sm:$0xff]
      %v851 = vld [vmem:[#allocation2 + $0x1e] sm:$0x7]
      %v852 = vld [vmem:[%s3 + $0x10] sm:$0xff]
      %v854 = vsel %vm256, %v848, 0
      %v857 = vsel %vm256, %v849, 0
      %v860 = vsel %vm256, %v850, 0
      %v863 = vsel %vm256, %v851, 0
      %865 = vmatpush.msra.mxu0 0.0
      %866 = vmatpush.msra.mxu0 0.0
      %867 = vmatpush.msra.mxu0 0.0
      %868 = vmatpush.msra.mxu0 0.0
      %869 = vmatpush.msra.mxu0 0.0
      %870 = vmatpush.msra.mxu0 0.0
      %871 = vmatpush.msra.mxu0 0.0
      %872 = vmatpush.msra.mxu0 0.0
      %873 = vmatpush.msra.mxu0 0.0
      %874 = vmatpush.msra.mxu0 0.0
      %875 = vmatpush.msra.mxu0 0.0
      %876 = vmatpush.msra.mxu0 0.0
      %877 = vmatpush.msra.mxu0 0.0
      %878 = vmatpush.msra.mxu0 0.0
      %879 = vmatpush.msra.mxu0 0.0
      %880 = vmatpush.msra.mxu0 %v852
      %881 = vmatmul.f32.gmra.mxu0 %v854
      %v882 = vpop.f32.mrf.mxu0
      %v883 = vadd.f32 0.0, %v882
      %884 = vmatmul.f32.gmra.mxu0 %v857
      %v885 = vpop.f32.mrf.mxu0
      %v886 = vadd.f32 0.0, %v885
      %887 = vmatmul.f32.gmra.mxu0 %v860
      %v888 = vpop.f32.mrf.mxu0
      %v889 = vadd.f32 0.0, %v888
      %890 = vmatmul.f32.gmra.mxu0 %v863
      %v891 = vpop.f32.mrf.mxu0
      %v892 = vadd.f32 0.0, %v891
      %893 = vdwg.mxu0
      %v894 = vadd.f32 %v844, %v883
      %v895 = vadd.f32 %v845, %v886
      %v896 = vadd.f32 %v846, %v889
      %v897 = vadd.f32 %v847, %v892
      %v898 = vld [vmem:[#allocation2 + $0x7] sm:$0xff]
      %v899 = vld [vmem:[#allocation2 + $0xf] sm:$0xff]
      %v900 = vld [vmem:[#allocation2 + $0x17] sm:$0xff]
      %v901 = vld [vmem:[#allocation2 + $0x1f] sm:$0x7]
      %v902 = vld [vmem:[%s3 + $0x18] sm:$0xff]
      %v904 = vsel %vm256, %v898, 0
      %v907 = vsel %vm256, %v899, 0
      %v910 = vsel %vm256, %v900, 0
      %v913 = vsel %vm256, %v901, 0
      %915 = vmatpush.msra.mxu0 0.0
      %916 = vmatpush.msra.mxu0 0.0
      %917 = vmatpush.msra.mxu0 0.0
      %918 = vmatpush.msra.mxu0 0.0
      %919 = vmatpush.msra.mxu0 0.0
      %920 = vmatpush.msra.mxu0 0.0
      %921 = vmatpush.msra.mxu0 0.0
      %922 = vmatpush.msra.mxu0 0.0
      %923 = vmatpush.msra.mxu0 0.0
      %924 = vmatpush.msra.mxu0 0.0
      %925 = vmatpush.msra.mxu0 0.0
      %926 = vmatpush.msra.mxu0 0.0
      %927 = vmatpush.msra.mxu0 0.0
      %928 = vmatpush.msra.mxu0 0.0
      %929 = vmatpush.msra.mxu0 0.0
      %930 = vmatpush.msra.mxu0 %v902
      %931 = vmatmul.f32.gmra.mxu0 %v904
      %v932 = vpop.f32.mrf.mxu0
      %v933 = vadd.f32 0.0, %v932
      %934 = vmatmul.f32.gmra.mxu0 %v907
      %v935 = vpop.f32.mrf.mxu0
      %v936 = vadd.f32 0.0, %v935
      %937 = vmatmul.f32.gmra.mxu0 %v910
      %v938 = vpop.f32.mrf.mxu0
      %v939 = vadd.f32 0.0, %v938
      %940 = vmatmul.f32.gmra.mxu0 %v913
      %v941 = vpop.f32.mrf.mxu0
      %v942 = vadd.f32 0.0, %v941
      %943 = vdwg.mxu0
      %v944 = vadd.f32 %v894, %v933
      %v945 = vadd.f32 %v895, %v936
      %v946 = vadd.f32 %v896, %v939
      %v947 = vadd.f32 %v897, %v942
      %v948 = vmax.f32 %v944, 0.0
      %v949 = vmax.f32 %v945, 0.0
      %v950 = vmax.f32 %v946, 0.0
      %v951 = vmax.f32 %v947, 0.0
      %952 = vst.msk [vmem:[#allocation2 + $0x4] sm:$0xf] %vm253, 0.0
      %953 = vst.msk [vmem:[#allocation2 + $0x23] sm:$0xf] %vm253, 0.0
      %954 = vst.msk [vmem:[#allocation2 + $0x8] sm:$0xff] %vm256, %v948
      %955 = vst.msk [vmem:[#allocation2 + $0x10] sm:$0xff] %vm256, %v949
      %956 = vst.msk [vmem:[#allocation2 + $0x18] sm:$0xff] %vm256, %v950
      %vm957 = vcmask 59392
      %958 = vst.msk [vmem:[#allocation2 + $0x20] sm:$0x7] %vm957, %v951
      %v959 = vld [vmem:[#allocation2 + $0x4] sm:$0xff]
      %v960 = vld [vmem:[#allocation2 + $0xc] sm:$0xff]
      %v961 = vld [vmem:[#allocation2 + $0x14] sm:$0xff]
      %v962 = vld [vmem:[#allocation2 + $0x1c] sm:$0xff]
      %v963 = vld [vmem:[%s3 + $0x20] sm:$0xff]
      %v964 = vld [vmem:[%s4 + $0x1] sm:$0x1]
      %v965 = vperm.slane %v964, 0
      %v967 = vsel %vm256, %v959, 0
      %v970 = vsel %vm256, %v960, 0
      %v973 = vsel %vm256, %v961, 0
      %v976 = vsel %vm256, %v962, 0
      %978 = vmatpush.msra.mxu0 0.0
      %979 = vmatpush.msra.mxu0 0.0
      %980 = vmatpush.msra.mxu0 0.0
      %981 = vmatpush.msra.mxu0 0.0
      %982 = vmatpush.msra.mxu0 0.0
      %983 = vmatpush.msra.mxu0 0.0
      %984 = vmatpush.msra.mxu0 0.0
      %985 = vmatpush.msra.mxu0 0.0
      %986 = vmatpush.msra.mxu0 0.0
      %987 = vmatpush.msra.mxu0 0.0
      %988 = vmatpush.msra.mxu0 0.0
      %989 = vmatpush.msra.mxu0 0.0
      %990 = vmatpush.msra.mxu0 0.0
      %991 = vmatpush.msra.mxu0 0.0
      %992 = vmatpush.msra.mxu0 0.0
      %993 = vmatpush.msra.mxu0 %v963
      %994 = vmatmul.f32.gmra.mxu0 %v967
      %v995 = vpop.f32.mrf.mxu0
      %v996 = vadd.f32 %v965, %v995
      %997 = vmatmul.f32.gmra.mxu0 %v970
      %v998 = vpop.f32.mrf.mxu0
      %v999 = vadd.f32 %v965, %v998
      %1000 = vmatmul.f32.gmra.mxu0 %v973
      %v1001 = vpop.f32.mrf.mxu0
      %v1002 = vadd.f32 %v965, %v1001
      %1003 = vmatmul.f32.gmra.mxu0 %v976
      %v1004 = vpop.f32.mrf.mxu0
      %v1005 = vadd.f32 %v965, %v1004
      %1006 = vdwg.mxu0
      %v1007 = vld [vmem:[#allocation2 + $0x5] sm:$0xff]
      %v1008 = vld [vmem:[#allocation2 + $0xd] sm:$0xff]
      %v1009 = vld [vmem:[#allocation2 + $0x15] sm:$0xff]
      %v1010 = vld [vmem:[#allocation2 + $0x1d] sm:$0xff]
      %v1011 = vld [vmem:[%s3 + $0x28] sm:$0xff]
      %v1013 = vsel %vm256, %v1007, 0
      %v1016 = vsel %vm256, %v1008, 0
      %v1019 = vsel %vm256, %v1009, 0
      %v1022 = vsel %vm256, %v1010, 0
      %1024 = vmatpush.msra.mxu0 0.0
      %1025 = vmatpush.msra.mxu0 0.0
      %1026 = vmatpush.msra.mxu0 0.0
      %1027 = vmatpush.msra.mxu0 0.0
      %1028 = vmatpush.msra.mxu0 0.0
      %1029 = vmatpush.msra.mxu0 0.0
      %1030 = vmatpush.msra.mxu0 0.0
      %1031 = vmatpush.msra.mxu0 0.0
      %1032 = vmatpush.msra.mxu0 0.0
      %1033 = vmatpush.msra.mxu0 0.0
      %1034 = vmatpush.msra.mxu0 0.0
      %1035 = vmatpush.msra.mxu0 0.0
      %1036 = vmatpush.msra.mxu0 0.0
      %1037 = vmatpush.msra.mxu0 0.0
      %1038 = vmatpush.msra.mxu0 0.0
      %1039 = vmatpush.msra.mxu0 %v1011
      %1040 = vmatmul.f32.gmra.mxu0 %v1013
      %v1041 = vpop.f32.mrf.mxu0
      %v1042 = vadd.f32 0.0, %v1041
      %1043 = vmatmul.f32.gmra.mxu0 %v1016
      %v1044 = vpop.f32.mrf.mxu0
      %v1045 = vadd.f32 0.0, %v1044
      %1046 = vmatmul.f32.gmra.mxu0 %v1019
      %v1047 = vpop.f32.mrf.mxu0
      %v1048 = vadd.f32 0.0, %v1047
      %1049 = vmatmul.f32.gmra.mxu0 %v1022
      %v1050 = vpop.f32.mrf.mxu0
      %v1051 = vadd.f32 0.0, %v1050
      %1052 = vdwg.mxu0
      %v1053 = vadd.f32 %v996, %v1042
      %v1054 = vadd.f32 %v999, %v1045
      %v1055 = vadd.f32 %v1002, %v1048
      %v1056 = vadd.f32 %v1005, %v1051
      %v1057 = vld [vmem:[#allocation2 + $0x6] sm:$0xff]
      %v1058 = vld [vmem:[#allocation2 + $0xe] sm:$0xff]
      %v1059 = vld [vmem:[#allocation2 + $0x16] sm:$0xff]
      %v1060 = vld [vmem:[#allocation2 + $0x1e] sm:$0xff]
      %v1061 = vld [vmem:[%s3 + $0x30] sm:$0xff]
      %v1063 = vsel %vm256, %v1057, 0
      %v1066 = vsel %vm256, %v1058, 0
      %v1069 = vsel %vm256, %v1059, 0
      %v1072 = vsel %vm256, %v1060, 0
      %1074 = vmatpush.msra.mxu0 0.0
      %1075 = vmatpush.msra.mxu0 0.0
      %1076 = vmatpush.msra.mxu0 0.0
      %1077 = vmatpush.msra.mxu0 0.0
      %1078 = vmatpush.msra.mxu0 0.0
      %1079 = vmatpush.msra.mxu0 0.0
      %1080 = vmatpush.msra.mxu0 0.0
      %1081 = vmatpush.msra.mxu0 0.0
      %1082 = vmatpush.msra.mxu0 0.0
      %1083 = vmatpush.msra.mxu0 0.0
      %1084 = vmatpush.msra.mxu0 0.0
      %1085 = vmatpush.msra.mxu0 0.0
      %1086 = vmatpush.msra.mxu0 0.0
      %1087 = vmatpush.msra.mxu0 0.0
      %1088 = vmatpush.msra.mxu0 0.0
      %1089 = vmatpush.msra.mxu0 %v1061
      %1090 = vmatmul.f32.gmra.mxu0 %v1063
      %v1091 = vpop.f32.mrf.mxu0
      %v1092 = vadd.f32 0.0, %v1091
      %1093 = vmatmul.f32.gmra.mxu0 %v1066
      %v1094 = vpop.f32.mrf.mxu0
      %v1095 = vadd.f32 0.0, %v1094
      %1096 = vmatmul.f32.gmra.mxu0 %v1069
      %v1097 = vpop.f32.mrf.mxu0
      %v1098 = vadd.f32 0.0, %v1097
      %1099 = vmatmul.f32.gmra.mxu0 %v1072
      %v1100 = vpop.f32.mrf.mxu0
      %v1101 = vadd.f32 0.0, %v1100
      %1102 = vdwg.mxu0
      %v1103 = vadd.f32 %v1053, %v1092
      %v1104 = vadd.f32 %v1054, %v1095
      %v1105 = vadd.f32 %v1055, %v1098
      %v1106 = vadd.f32 %v1056, %v1101
      %v1107 = vld [vmem:[#allocation2 + $0x7] sm:$0xff]
      %v1108 = vld [vmem:[#allocation2 + $0xf] sm:$0xff]
      %v1109 = vld [vmem:[#allocation2 + $0x17] sm:$0xff]
      %v1110 = vld [vmem:[#allocation2 + $0x1f] sm:$0xff]
      %v1111 = vld [vmem:[%s3 + $0x38] sm:$0xff]
      %v1113 = vsel %vm256, %v1107, 0
      %v1116 = vsel %vm256, %v1108, 0
      %v1119 = vsel %vm256, %v1109, 0
      %v1122 = vsel %vm256, %v1110, 0
      %1124 = vmatpush.msra.mxu0 0.0
      %1125 = vmatpush.msra.mxu0 0.0
      %1126 = vmatpush.msra.mxu0 0.0
      %1127 = vmatpush.msra.mxu0 0.0
      %1128 = vmatpush.msra.mxu0 0.0
      %1129 = vmatpush.msra.mxu0 0.0
      %1130 = vmatpush.msra.mxu0 0.0
      %1131 = vmatpush.msra.mxu0 0.0
      %1132 = vmatpush.msra.mxu0 0.0
      %1133 = vmatpush.msra.mxu0 0.0
      %1134 = vmatpush.msra.mxu0 0.0
      %1135 = vmatpush.msra.mxu0 0.0
      %1136 = vmatpush.msra.mxu0 0.0
      %1137 = vmatpush.msra.mxu0 0.0
      %1138 = vmatpush.msra.mxu0 0.0
      %1139 = vmatpush.msra.mxu0 %v1111
      %1140 = vmatmul.f32.gmra.mxu0 %v1113
      %v1141 = vpop.f32.mrf.mxu0
      %v1142 = vadd.f32 0.0, %v1141
      %1143 = vmatmul.f32.gmra.mxu0 %v1116
      %v1144 = vpop.f32.mrf.mxu0
      %v1145 = vadd.f32 0.0, %v1144
      %1146 = vmatmul.f32.gmra.mxu0 %v1119
      %v1147 = vpop.f32.mrf.mxu0
      %v1148 = vadd.f32 0.0, %v1147
      %1149 = vmatmul.f32.gmra.mxu0 %v1122
      %v1150 = vpop.f32.mrf.mxu0
      %v1151 = vadd.f32 0.0, %v1150
      %1152 = vdwg.mxu0
      %v1153 = vadd.f32 %v1103, %v1142
      %v1154 = vadd.f32 %v1104, %v1145
      %v1155 = vadd.f32 %v1105, %v1148
      %v1156 = vadd.f32 %v1106, %v1151
      %1157 = vst.msk [vmem:[#allocation2 + $0x3] sm:$0x1f] %vm399, 0.0
      %1158 = vst.msk [vmem:[#allocation2 + $0x28] sm:$0x1f] %vm399, 0.0
      %1159 = vst.msk [vmem:[#allocation2 + $0x8] sm:$0xff] %vm256, %v1153
      %1160 = vst.msk [vmem:[#allocation2 + $0x10] sm:$0xff] %vm256, %v1154
      %1161 = vst.msk [vmem:[#allocation2 + $0x18] sm:$0xff] %vm256, %v1155
      %1162 = vst.msk [vmem:[#allocation2 + $0x20] sm:$0xff] %vm256, %v1156
      %v1163 = vld [vmem:[#allocation2 + $0x3] sm:$0xff]
      %v1164 = vld [vmem:[#allocation2 + $0xb] sm:$0xff]
      %v1165 = vld [vmem:[#allocation2 + $0x13] sm:$0xff]
      %v1166 = vld [vmem:[#allocation2 + $0x1b] sm:$0xff]
      %v1167 = vld [vmem:[#allocation2 + $0x23] sm:$0xf]
      %v1168 = vld [vmem:[%s3 + $0x40] sm:$0xff]
      %v1169 = vld [vmem:[%s4 + $0x2] sm:$0x1]
      %v1170 = vperm.slane %v1169, 0
      %v1172 = vsel %vm256, %v1163, 0
      %v1175 = vsel %vm256, %v1164, 0
      %v1178 = vsel %vm256, %v1165, 0
      %v1181 = vsel %vm256, %v1166, 0
      %v1184 = vsel %vm256, %v1167, 0
      %1186 = vmatpush.msra.mxu0 0.0
      %1187 = vmatpush.msra.mxu0 0.0
      %1188 = vmatpush.msra.mxu0 0.0
      %1189 = vmatpush.msra.mxu0 0.0
      %1190 = vmatpush.msra.mxu0 0.0
      %1191 = vmatpush.msra.mxu0 0.0
      %1192 = vmatpush.msra.mxu0 0.0
      %1193 = vmatpush.msra.mxu0 0.0
      %1194 = vmatpush.msra.mxu0 0.0
      %1195 = vmatpush.msra.mxu0 0.0
      %1196 = vmatpush.msra.mxu0 0.0
      %1197 = vmatpush.msra.mxu0 0.0
      %1198 = vmatpush.msra.mxu0 0.0
      %1199 = vmatpush.msra.mxu0 0.0
      %1200 = vmatpush.msra.mxu0 0.0
      %1201 = vmatpush.msra.mxu0 %v1168
      %1202 = vmatmul.f32.gmra.mxu0 %v1172
      %v1203 = vpop.f32.mrf.mxu0
      %v1204 = vadd.f32 %v1170, %v1203
      %1205 = vmatmul.f32.gmra.mxu0 %v1175
      %v1206 = vpop.f32.mrf.mxu0
      %v1207 = vadd.f32 %v1170, %v1206
      %1208 = vmatmul.f32.gmra.mxu0 %v1178
      %v1209 = vpop.f32.mrf.mxu0
      %v1210 = vadd.f32 %v1170, %v1209
      %1211 = vmatmul.f32.gmra.mxu0 %v1181
      %v1212 = vpop.f32.mrf.mxu0
      %v1213 = vadd.f32 %v1170, %v1212
      %1214 = vmatmul.f32.gmra.mxu0 %v1184
      %v1215 = vpop.f32.mrf.mxu0
      %v1216 = vadd.f32 %v1170, %v1215
      %1217 = vdwg.mxu0
      %v1218 = vld [vmem:[#allocation2 + $0x5] sm:$0xff]
      %v1219 = vld [vmem:[#allocation2 + $0xd] sm:$0xff]
      %v1220 = vld [vmem:[#allocation2 + $0x15] sm:$0xff]
      %v1221 = vld [vmem:[#allocation2 + $0x1d] sm:$0xff]
      %v1222 = vld [vmem:[#allocation2 + $0x25] sm:$0xf]
      %v1223 = vld [vmem:[%s3 + $0x48] sm:$0xff]
      %v1225 = vsel %vm256, %v1218, 0
      %v1228 = vsel %vm256, %v1219, 0
      %v1231 = vsel %vm256, %v1220, 0
      %v1234 = vsel %vm256, %v1221, 0
      %v1237 = vsel %vm256, %v1222, 0
      %1239 = vmatpush.msra.mxu0 0.0
      %1240 = vmatpush.msra.mxu0 0.0
      %1241 = vmatpush.msra.mxu0 0.0
      %1242 = vmatpush.msra.mxu0 0.0
      %1243 = vmatpush.msra.mxu0 0.0
      %1244 = vmatpush.msra.mxu0 0.0
      %1245 = vmatpush.msra.mxu0 0.0
      %1246 = vmatpush.msra.mxu0 0.0
      %1247 = vmatpush.msra.mxu0 0.0
      %1248 = vmatpush.msra.mxu0 0.0
      %1249 = vmatpush.msra.mxu0 0.0
      %1250 = vmatpush.msra.mxu0 0.0
      %1251 = vmatpush.msra.mxu0 0.0
      %1252 = vmatpush.msra.mxu0 0.0
      %1253 = vmatpush.msra.mxu0 0.0
      %1254 = vmatpush.msra.mxu0 %v1223
      %1255 = vmatmul.f32.gmra.mxu0 %v1225
      %v1256 = vpop.f32.mrf.mxu0
      %v1257 = vadd.f32 0.0, %v1256
      %1258 = vmatmul.f32.gmra.mxu0 %v1228
      %v1259 = vpop.f32.mrf.mxu0
      %v1260 = vadd.f32 0.0, %v1259
      %1261 = vmatmul.f32.gmra.mxu0 %v1231
      %v1262 = vpop.f32.mrf.mxu0
      %v1263 = vadd.f32 0.0, %v1262
      %1264 = vmatmul.f32.gmra.mxu0 %v1234
      %v1265 = vpop.f32.mrf.mxu0
      %v1266 = vadd.f32 0.0, %v1265
      %1267 = vmatmul.f32.gmra.mxu0 %v1237
      %v1268 = vpop.f32.mrf.mxu0
      %v1269 = vadd.f32 0.0, %v1268
      %1270 = vdwg.mxu0
      %v1271 = vadd.f32 %v1204, %v1257
      %v1272 = vadd.f32 %v1207, %v1260
      %v1273 = vadd.f32 %v1210, %v1263
      %v1274 = vadd.f32 %v1213, %v1266
      %v1275 = vadd.f32 %v1216, %v1269
      %v1276 = vld [vmem:[#allocation2 + $0x7] sm:$0xff]
      %v1277 = vld [vmem:[#allocation2 + $0xf] sm:$0xff]
      %v1278 = vld [vmem:[#allocation2 + $0x17] sm:$0xff]
      %v1279 = vld [vmem:[#allocation2 + $0x1f] sm:$0xff]
      %v1280 = vld [vmem:[#allocation2 + $0x27] sm:$0xf]
      %v1281 = vld [vmem:[%s3 + $0x50] sm:$0xff]
      %v1283 = vsel %vm256, %v1276, 0
      %v1286 = vsel %vm256, %v1277, 0
      %v1289 = vsel %vm256, %v1278, 0
      %v1292 = vsel %vm256, %v1279, 0
      %v1295 = vsel %vm256, %v1280, 0
      %1297 = vmatpush.msra.mxu0 0.0
      %1298 = vmatpush.msra.mxu0 0.0
      %1299 = vmatpush.msra.mxu0 0.0
      %1300 = vmatpush.msra.mxu0 0.0
      %1301 = vmatpush.msra.mxu0 0.0
      %1302 = vmatpush.msra.mxu0 0.0
      %1303 = vmatpush.msra.mxu0 0.0
      %1304 = vmatpush.msra.mxu0 0.0
      %1305 = vmatpush.msra.mxu0 0.0
      %1306 = vmatpush.msra.mxu0 0.0
      %1307 = vmatpush.msra.mxu0 0.0
      %1308 = vmatpush.msra.mxu0 0.0
      %1309 = vmatpush.msra.mxu0 0.0
      %1310 = vmatpush.msra.mxu0 0.0
      %1311 = vmatpush.msra.mxu0 0.0
      %1312 = vmatpush.msra.mxu0 %v1281
      %1313 = vmatmul.f32.gmra.mxu0 %v1283
      %v1314 = vpop.f32.mrf.mxu0
      %v1315 = vadd.f32 0.0, %v1314
      %1316 = vmatmul.f32.gmra.mxu0 %v1286
      %v1317 = vpop.f32.mrf.mxu0
      %v1318 = vadd.f32 0.0, %v1317
      %1319 = vmatmul.f32.gmra.mxu0 %v1289
      %v1320 = vpop.f32.mrf.mxu0
      %v1321 = vadd.f32 0.0, %v1320
      %1322 = vmatmul.f32.gmra.mxu0 %v1292
      %v1323 = vpop.f32.mrf.mxu0
      %v1324 = vadd.f32 0.0, %v1323
      %1325 = vmatmul.f32.gmra.mxu0 %v1295
      %v1326 = vpop.f32.mrf.mxu0
      %v1327 = vadd.f32 0.0, %v1326
      %1328 = vdwg.mxu0
      %v1329 = vadd.f32 %v1271, %v1315
      %v1330 = vadd.f32 %v1272, %v1318
      %v1331 = vadd.f32 %v1273, %v1321
      %v1332 = vadd.f32 %v1274, %v1324
      %v1333 = vadd.f32 %v1275, %v1327
      %v1334 = vld [vmem:[#allocation2 + $0x9] sm:$0xff]
      %v1335 = vld [vmem:[#allocation2 + $0x11] sm:$0xff]
      %v1336 = vld [vmem:[#allocation2 + $0x19] sm:$0xff]
      %v1337 = vld [vmem:[#allocation2 + $0x21] sm:$0xff]
      %v1338 = vld [vmem:[#allocation2 + $0x29] sm:$0xf]
      %v1339 = vld [vmem:[%s3 + $0x58] sm:$0xff]
      %v1341 = vsel %vm256, %v1334, 0
      %v1344 = vsel %vm256, %v1335, 0
      %v1347 = vsel %vm256, %v1336, 0
      %v1350 = vsel %vm256, %v1337, 0
      %v1353 = vsel %vm256, %v1338, 0
      %1355 = vmatpush.msra.mxu0 0.0
      %1356 = vmatpush.msra.mxu0 0.0
      %1357 = vmatpush.msra.mxu0 0.0
      %1358 = vmatpush.msra.mxu0 0.0
      %1359 = vmatpush.msra.mxu0 0.0
      %1360 = vmatpush.msra.mxu0 0.0
      %1361 = vmatpush.msra.mxu0 0.0
      %1362 = vmatpush.msra.mxu0 0.0
      %1363 = vmatpush.msra.mxu0 0.0
      %1364 = vmatpush.msra.mxu0 0.0
      %1365 = vmatpush.msra.mxu0 0.0
      %1366 = vmatpush.msra.mxu0 0.0
      %1367 = vmatpush.msra.mxu0 0.0
      %1368 = vmatpush.msra.mxu0 0.0
      %1369 = vmatpush.msra.mxu0 0.0
      %1370 = vmatpush.msra.mxu0 %v1339
      %1371 = vmatmul.f32.gmra.mxu0 %v1341
      %v1372 = vpop.f32.mrf.mxu0
      %v1373 = vadd.f32 0.0, %v1372
      %1374 = vmatmul.f32.gmra.mxu0 %v1344
      %v1375 = vpop.f32.mrf.mxu0
      %v1376 = vadd.f32 0.0, %v1375
      %1377 = vmatmul.f32.gmra.mxu0 %v1347
      %v1378 = vpop.f32.mrf.mxu0
      %v1379 = vadd.f32 0.0, %v1378
      %1380 = vmatmul.f32.gmra.mxu0 %v1350
      %v1381 = vpop.f32.mrf.mxu0
      %v1382 = vadd.f32 0.0, %v1381
      %1383 = vmatmul.f32.gmra.mxu0 %v1353
      %v1384 = vpop.f32.mrf.mxu0
      %v1385 = vadd.f32 0.0, %v1384
      %1386 = vdwg.mxu0
      %v1387 = vadd.f32 %v1329, %v1373
      %v1388 = vadd.f32 %v1330, %v1376
      %v1389 = vadd.f32 %v1331, %v1379
      %v1390 = vadd.f32 %v1332, %v1382
      %v1391 = vadd.f32 %v1333, %v1385
      %1392 = vst.msk [vmem:[%s221] sm:$0xff] %vm256, %v1387
      %1393 = vst.msk [vmem:[%s221 + $0x8] sm:$0xff] %vm256, %v1388
      %1394 = vst.msk [vmem:[%s221 + $0x10] sm:$0xff] %vm256, %v1389
      %1395 = vst.msk [vmem:[%s221 + $0x18] sm:$0xff] %vm256, %v1390
      %1396 = vst.msk [vmem:[%s221 + $0x20] sm:$0xf] %vm253, %v1391
      %p1397 = scmp.lt.s32.totalorder %s16, 1
      %s1398 = scalar_select %p1397, %s16, 1
      %s1399 = smul.addr %s1398, 5
      %s1400 = smul.addr %s1399, 8
      %s1401 = scalar_lea.vmem %s5, %s1400
      // Predicated region
      $region41: #{idcnn_forward.1} parent=39 // pred_check
        %p1402 = pneg %p144
      $region42: #{idcnn_forward.1} parent=39 // pred_check_branch
        %1404 = sbr.rel (%p1402) target = $region44
      $region43: #{idcnn_forward.1} parent=39 // pred_region
        _
      $region44: #{idcnn_forward.1} parent=39 // pred_fallthru
        _
    $region40: #{idcnn_forward.1} parent=5 // pred_fallthru
      _
    %p1405 = scmp.le.s32.totalorder 2, %s11
    // Predicated region
    $region45: #{idcnn_forward.1} parent=5 // pred_check
      %p1406 = pneg %p1405
    $region46: #{idcnn_forward.1} parent=5 // pred_check_branch
      %1408 = sbr.rel (%p1406) target = $region48
    $region47: #{idcnn_forward.1} parent=5 // pred_region
      %s1409 = ssub.s32 %s11, 2
      // Predicated region
      $region49: #{idcnn_forward.1} parent=47 // pred_check
        %p1410 = pneg %p150
      $region50: #{idcnn_forward.1} parent=47 // pred_check_branch
        %1412 = sbr.rel (%p1410) target = $region52
      $region51: #{idcnn_forward.1} parent=47 // pred_region
        %p1413 = scmp.lt.s32.totalorder %s17, 1
        %s1414 = scalar_select %p1413, %s17, 1
        %s1415 = smul.addr %s1414, 5
        %s1416 = smul.addr %s1415, 8
        %s1417 = scalar_lea.vmem %s5, %s1416
      $region52: #{idcnn_forward.1} parent=47 // pred_fallthru
        _
    $region48: #{idcnn_forward.1} parent=5 // pred_fallthru
      _
  $region6: #{idcnn_forward.1} parent=0 // loop_footer
    %s15 = sadd.s32 1, %s11
  $region7: #{idcnn_forward.1} parent=0 // loop_footer_branch
    %10 = sbr.rel target = $region3
  $region8: #{idcnn_forward.1} parent=0 // loop_exit
    _

</llo_original>
